<compile_context>
chip_gen: v7x
topology: tpu7x:2x2x1
jax: 0.10.0
libtpu: 0.0.40
codegen_flags: <defaults>
</compile_context>

<pallas_src>
import jax
import jax.numpy as jnp
from jax.experimental import pallas as pl
from jax.experimental.pallas import tpu as pltpu


PLU_ALPHA = 0.1
PLU_C = 1.0
_PLU_K = PLU_C * (1.0 - PLU_ALPHA)  # folded constant: alpha*(x±c)∓c = alpha*x ∓ k


def _plu_ref(x):
    # Reference form (matches the PyTorch PLU exactly, in f32).
    return jnp.maximum(
        PLU_ALPHA * (x + PLU_C) - PLU_C,
        jnp.minimum(PLU_ALPHA * (x - PLU_C) + PLU_C, x),
    )


def _plu_biased(z, b):
    # Fused (z + b) followed by PLU, simplified:
    #   PLU(v) = max(alpha*v - k, min(alpha*v + k, v)),  k = c*(1 - alpha)
    v = z + b
    t = PLU_ALPHA * v
    return jnp.maximum(t - _PLU_K, jnp.minimum(t + _PLU_K, v))


def offset_encoder_kernel(x_ref, w0_ref, b0_ref, w1_ref, b1_ref, o_ref):
    # x_ref:  (tm, in_dim)  f32
    # w0_ref: (in_dim, hidden)   bf16    b0_ref: (1, hidden)   f32
    # w1_ref: (hidden, out_dim)  bf16    b1_ref: (1, out_dim)  f32
    # o_ref:  (tm, out_dim) f32
    x = x_ref[...].astype(jnp.bfloat16)

    # fc0: bf16 operands, f32 accumulation on the MXU.
    h = jnp.dot(x, w0_ref[...], preferred_element_type=jnp.float32)
    h = _plu_biased(h, b0_ref[...])          # f32 bias + PLU

    # fc1: dominant matmul (K=hidden, N=out_dim), also bf16 x bf16 -> f32.
    y = jnp.dot(h.astype(jnp.bfloat16), w1_ref[...],
                preferred_element_type=jnp.float32)
    y = _plu_biased(y, b1_ref[...])

    o_ref[...] = y.astype(o_ref.dtype)


def offset_encoder(x, w0, b0, w1, b1, *, tm=1024):
    """x: (N, in_dim) float32. Returns (N, out_dim) float32."""
    N, in_dim = x.shape
    hidden = w0.shape[1]
    out_dim = w1.shape[1]

    # ---- tile-size selection ----------------------------------------------
    # Large row tiles amortize the ~0.35 us per-grid-step overhead, but cap tm
    # so the grid keeps >= 4 steps when the batch allows it (>= 2 steps per
    # TensorCore on a 2-TC v7x chip, sharded on the "parallel" axis).  Keep tm
    # a multiple of 8 (sublane granularity).
    quarter = 8 * pl.cdiv(pl.cdiv(N, 4), 8)
    tm = int(max(8, min(tm, quarter)))

    # Ragged grid: Pallas pads the tail block's reads and masks its stores,
    # so no wrapper-side jnp.pad / output slice is needed.
    grid = (pl.cdiv(N, tm),)

    # Cast weights once here (not per grid step inside the kernel).
    w0_bf = w0.astype(jnp.bfloat16)
    w1_bf = w1.astype(jnp.bfloat16)
    b0_2d = b0.reshape(1, hidden).astype(jnp.float32)
    b1_2d = b1.reshape(1, out_dim).astype(jnp.float32)

    out = pl.pallas_call(
        offset_encoder_kernel,
        out_shape=jax.ShapeDtypeStruct((N, out_dim), x.dtype),
        grid_spec=pltpu.PrefetchScalarGridSpec(
            num_scalar_prefetch=0,
            grid=grid,
            in_specs=[
                pl.BlockSpec((tm, in_dim), lambda i: (i, 0)),       # x row tile
                pl.BlockSpec((in_dim, hidden), lambda i: (0, 0)),   # W0 (resident, bf16)
                pl.BlockSpec((1, hidden), lambda i: (0, 0)),        # b0 (resident, f32)
                pl.BlockSpec((hidden, out_dim), lambda i: (0, 0)),  # W1 (resident, bf16)
                pl.BlockSpec((1, out_dim), lambda i: (0, 0)),       # b1 (resident, f32)
            ],
            out_specs=pl.BlockSpec((tm, out_dim), lambda i: (i, 0)),
        ),
        compiler_params=pltpu.CompilerParams(
            dimension_semantics=("parallel",),
        ),
    )(x, w0_bf, b0_2d, w1_bf, b1_2d)

    return out


def offset_encoder_ref(x, w0, b0, w1, b1):
    # Pure f32 reference matching the PyTorch module.
    h = _plu_ref(x @ w0 + b0)
    return _plu_ref(h @ w1 + b1)


if __name__ == "__main__":
    # Module defaults: hidden_dim=512, out_dim=256; small in_dim and a batch
    # that is NOT a multiple of the row tile, to exercise the ragged-grid path.
    N, in_dim, hidden_dim, out_dim = 1000, 16, 512, 256

    key = jax.random.PRNGKey(0)
    kx, kw0, kb0, kw1, kb1 = jax.random.split(key, 5)

    x = jax.random.normal(kx, (N, in_dim), dtype=jnp.float32)

    # Deterministic init mimicking nn.Linear's uniform(-1/sqrt(fan_in), ...).
    lim0 = 1.0 / jnp.sqrt(in_dim)
    lim1 = 1.0 / jnp.sqrt(hidden_dim)
    w0 = jax.random.uniform(kw0, (in_dim, hidden_dim), jnp.float32, -lim0, lim0)
    b0 = jax.random.uniform(kb0, (hidden_dim,), jnp.float32, -lim0, lim0)
    w1 = jax.random.uniform(kw1, (hidden_dim, out_dim), jnp.float32, -lim1, lim1)
    b1 = jax.random.uniform(kb1, (out_dim,), jnp.float32, -lim1, lim1)

    out = offset_encoder(x, w0, b0, w1, b1)
    out = jax.block_until_ready(out)

    ref = offset_encoder_ref(x, w0, b0, w1, b1)
    assert out.shape == (N, out_dim)
    # bf16 matmul operands (f32 accumulation) -> loosen tolerance vs the pure
    # f32 reference; observed error is ~1e-3 absolute on this distribution.
    assert jnp.allclose(out, ref, atol=2e-2, rtol=2e-2), "mismatch vs JAX reference"

    print("KERNEL_OK")
</pallas_src>

<mosaic_0001>
module attributes {stable_mosaic.version = 11 : i64} {
  func.func @offset_encoder_kernel(%arg0: i32, %arg1: memref<256x16xf32, #tpu.memory_space<vmem>>, %arg2: memref<16x512xbf16, #tpu.memory_space<vmem>>, %arg3: memref<1x512xf32, #tpu.memory_space<vmem>>, %arg4: memref<512x256xbf16, #tpu.memory_space<vmem>>, %arg5: memref<1x256xf32, #tpu.memory_space<vmem>>, %arg6: memref<256x256xf32, #tpu.memory_space<vmem>>) attributes {dimension_semantics = [#tpu.dimension_semantics<parallel>], iteration_bounds = array<i64: 4>, scalar_prefetch = 0 : i64, scratch_operands = 0 : i64, tpu.core_type = #tpu.core_type<tc>, window_params = [{transform_indices = @transform_0, window_bounds = array<i64: 256, 16>}, {pipeline_mode = #tpu.pipeline_mode<synchronous>, transform_indices = @transform_1, window_bounds = array<i64: 16, 512>}, {pipeline_mode = #tpu.pipeline_mode<synchronous>, transform_indices = @transform_2, window_bounds = array<i64: 1, 512>}, {pipeline_mode = #tpu.pipeline_mode<synchronous>, transform_indices = @transform_3, window_bounds = array<i64: 512, 256>}, {pipeline_mode = #tpu.pipeline_mode<synchronous>, transform_indices = @transform_4, window_bounds = array<i64: 1, 256>}, {transform_indices = @transform_5, window_bounds = array<i64: 256, 256>}]} {
    %c0 = arith.constant 0 : index
    %c0_0 = arith.constant 0 : index
    %0 = vector.load %arg1[%c0, %c0_0] : memref<256x16xf32, #tpu.memory_space<vmem>>, vector<256x16xf32>
    %1 = arith.truncf %0 : vector<256x16xf32> to vector<256x16xbf16>
    %c0_1 = arith.constant 0 : index
    %c0_2 = arith.constant 0 : index
    %2 = vector.load %arg2[%c0_1, %c0_2] : memref<16x512xbf16, #tpu.memory_space<vmem>>, vector<16x512xbf16>
    %cst = arith.constant dense<0.000000e+00> : vector<256x512xf32>
    %3 = tpu.matmul %1, %2, %cst {dimension_numbers = #tpu.dot_dimension_numbers<[1], [0], [0], [1], [0, 0, 1, 1], [], []>} : vector<256x16xbf16>, vector<16x512xbf16>, vector<256x512xf32> -> vector<256x512xf32>
    %c0_3 = arith.constant 0 : index
    %c0_4 = arith.constant 0 : index
    %4 = vector.load %arg3[%c0_3, %c0_4] : memref<1x512xf32, #tpu.memory_space<vmem>>, vector<1x512xf32>
    %5 = vector.broadcast %4 : vector<1x512xf32> to vector<256x512xf32>
    %6 = arith.addf %3, %5 : vector<256x512xf32>
    %cst_5 = arith.constant 1.000000e-01 : f32
    %7 = vector.broadcast %cst_5 : f32 to vector<256x512xf32>
    %8 = arith.mulf %7, %6 : vector<256x512xf32>
    %cst_6 = arith.constant 0.899999976 : f32
    %9 = vector.broadcast %cst_6 : f32 to vector<256x512xf32>
    %10 = arith.subf %8, %9 : vector<256x512xf32>
    %cst_7 = arith.constant 0.899999976 : f32
    %11 = vector.broadcast %cst_7 : f32 to vector<256x512xf32>
    %12 = arith.addf %8, %11 : vector<256x512xf32>
    %13 = arith.minimumf %12, %6 : vector<256x512xf32>
    %14 = arith.maximumf %10, %13 : vector<256x512xf32>
    %15 = arith.truncf %14 : vector<256x512xf32> to vector<256x512xbf16>
    %c0_8 = arith.constant 0 : index
    %c0_9 = arith.constant 0 : index
    %16 = vector.load %arg4[%c0_8, %c0_9] : memref<512x256xbf16, #tpu.memory_space<vmem>>, vector<512x256xbf16>
    %cst_10 = arith.constant dense<0.000000e+00> : vector<256x256xf32>
    %17 = tpu.matmul %15, %16, %cst_10 {dimension_numbers = #tpu.dot_dimension_numbers<[1], [0], [0], [1], [0, 0, 1, 1], [], []>} : vector<256x512xbf16>, vector<512x256xbf16>, vector<256x256xf32> -> vector<256x256xf32>
    %c0_11 = arith.constant 0 : index
    %c0_12 = arith.constant 0 : index
    %18 = vector.load %arg5[%c0_11, %c0_12] : memref<1x256xf32, #tpu.memory_space<vmem>>, vector<1x256xf32>
    %19 = vector.broadcast %18 : vector<1x256xf32> to vector<256x256xf32>
    %20 = arith.addf %17, %19 : vector<256x256xf32>
    %cst_13 = arith.constant 1.000000e-01 : f32
    %21 = vector.broadcast %cst_13 : f32 to vector<256x256xf32>
    %22 = arith.mulf %21, %20 : vector<256x256xf32>
    %cst_14 = arith.constant 0.899999976 : f32
    %23 = vector.broadcast %cst_14 : f32 to vector<256x256xf32>
    %24 = arith.subf %22, %23 : vector<256x256xf32>
    %cst_15 = arith.constant 0.899999976 : f32
    %25 = vector.broadcast %cst_15 : f32 to vector<256x256xf32>
    %26 = arith.addf %22, %25 : vector<256x256xf32>
    %27 = arith.minimumf %26, %20 : vector<256x256xf32>
    %28 = arith.maximumf %24, %27 : vector<256x256xf32>
    %c0_16 = arith.constant 0 : index
    %c0_17 = arith.constant 0 : index
    %29 = vector.load %arg6[%c0_16, %c0_17] : memref<256x256xf32, #tpu.memory_space<vmem>>, vector<256x256xf32>
    tpu.vector_store %arg6[%c0_16, %c0_17], %28 {strides = array<i32>} : memref<256x256xf32, #tpu.memory_space<vmem>>, vector<256x256xf32>,
    return
  }
  func.func @transform_0(%arg0: i32) -> (i32, i32) {
    %c0_i32 = arith.constant 0 : i32
    %c0_i32_0 = arith.constant 0 : i32
    return %arg0, %c0_i32 : i32, i32
  }
  func.func @transform_1(%arg0: i32) -> (i32, i32) {
    %c0_i32 = arith.constant 0 : i32
    %c0_i32_0 = arith.constant 0 : i32
    %c0_i32_1 = arith.constant 0 : i32
    return %c0_i32, %c0_i32_0 : i32, i32
  }
  func.func @transform_2(%arg0: i32) -> (i32, i32) {
    %c0_i32 = arith.constant 0 : i32
    %c0_i32_0 = arith.constant 0 : i32
    %c0_i32_1 = arith.constant 0 : i32
    return %c0_i32, %c0_i32_0 : i32, i32
  }
  func.func @transform_3(%arg0: i32) -> (i32, i32) {
    %c0_i32 = arith.constant 0 : i32
    %c0_i32_0 = arith.constant 0 : i32
    %c0_i32_1 = arith.constant 0 : i32
    return %c0_i32, %c0_i32_0 : i32, i32
  }
  func.func @transform_4(%arg0: i32) -> (i32, i32) {
    %c0_i32 = arith.constant 0 : i32
    %c0_i32_0 = arith.constant 0 : i32
    %c0_i32_1 = arith.constant 0 : i32
    return %c0_i32, %c0_i32_0 : i32, i32
  }
  func.func @transform_5(%arg0: i32) -> (i32, i32) {
    %c0_i32 = arith.constant 0 : i32
    %c0_i32_0 = arith.constant 0 : i32
    return %arg0, %c0_i32 : i32, i32
  }
}

</mosaic_0001>

<llo_original>
// kernel: tpu_custom_call.1
$region0: #{tpu_custom_call.1}
  #allocation0 [shape = 'u32[]', space=smem, size = 0x4, offset = 0x4, fixed_abs, tag = 'smem constant byte address 0x4 - core index']
  #allocation1 [shape = 'u32[144,128]{1,0:T(1,128)}', space=vmem, size = 0x12000, scoped, tag = 'internal scratch']
  %s0 = inlined_call_operand.vmem [shape: f32[1000,16], index: 0, kind: input, shape index: {}]
  %s1 = inlined_call_operand.vmem [shape: bf16[16,512], index: 1, kind: input, shape index: {}]
  %s2 = inlined_call_operand.vmem [shape: f32[1,512], index: 2, kind: input, shape index: {}]
  %s3 = inlined_call_operand.vmem [shape: bf16[512,256], index: 3, kind: input, shape index: {}]
  %s4 = inlined_call_operand.vmem [shape: f32[1,256], index: 4, kind: input, shape index: {}]
  %s5 = inlined_call_operand.hbm [shape: f32[1000,256], index: 5, kind: output, shape index: {}]
  %s6 = sld [smem:[#allocation0]]
  $region53: #{tpu_custom_call.1} parent=0
    _
  %s8 = ssub.s32 1, %s6
  %s9 = scalar_select 0, %s8, %s6
  $region1: #{tpu_custom_call.1} parent=0
    #allocation2 [shape = 'u8[524288]{0}', space=vmem, size = 0x80000, scoped, tag = 'output window, operand 0']
    #allocation3 [shape = 's32[2]{0}', space=sflag, size = 0x8, scoped, tag = 'scoped memory for tpu_custom_call.1']
    %10 = vsyncpa [#allocation3], 0
    %s11 = scalar_lea.sflag [#allocation3], 1
    %12 = vsyncpa %s11, 0
    loop: start=0, step=1, limit=6
    $region2: #{tpu_custom_call.1} parent=1 // loop_pre_header
      _
    $region3: #{tpu_custom_call.1} parent=1 // loop_header
      %s14 = sphi 0, %s18
      %p15 = scmp.ge.s32.totalorder %s14, 6
      %s24 = sphi 0, %s26
      %s27 = sphi 0, %s24
      %s28 = sphi 0, %s27
      %s44 = sphi 0, %s28
      %s48 = sphi 0, %s48
      %s50 = sphi 0, %s48
      %s51 = sphi 0, %s50
      %s65 = sphi 0, %s51
      %s69 = sphi 0, %s69
      %s71 = sphi 0, %s69
      %s72 = sphi 0, %s71
      %s86 = sphi 0, %s72
      %s90 = sphi 0, %s90
      %s92 = sphi 0, %s90
      %s93 = sphi 0, %s92
      %s107 = sphi 0, %s93
      %s111 = sphi 0, %s111
      %s113 = sphi 0, %s111
      %s114 = sphi 0, %s113
      %s128 = sphi 0, %s114
      %s134 = sphi 0, %s136
      %s137 = sphi 0, %s134
      %s138 = sphi 0, %s137
      %s154 = sphi 0, %s138
    $region4: #{tpu_custom_call.1} parent=1 // loop_header_branch
      %17 = sbr.rel (%p15) target = $region8
    $region5: #{tpu_custom_call.1} parent=1 // loop_body
      %s19 = ssub.s32 %s14, 1
      %s20 = ssub.s32 %s14, 2
      %s21 = sadd.s32 %s14, 1
      %s22 = ssub.s32 %s14, %s21
      %p23 = scmp.eq.s32.totalorder %s22, 0
      %s25 = sadd.s32 %s24, 1
      %s26 = scalar_select %p23, %s24, %s25
      %p29 = pneg %p23
      %p30 = scmp.eq.s32.totalorder %s14, 3
      %p31 = por %p29, %p30
      %p32 = scmp.ne.s32.totalorder %s24, %s27
      %p33 = scmp.eq.s32.totalorder %s14, 0
      %p34 = por %p32, %p33
      %p35 = scmp.ne.s32.totalorder %s24, %s27
      %p36 = scmp.eq.s32.totalorder %s19, 3
      %p37 = por %p35, %p36
      %p38 = scmp.ne.s32.totalorder %s27, %s28
      %p39 = scmp.eq.s32.totalorder %s19, 0
      %p40 = por %p38, %p39
      %p41 = scmp.ne.s32.totalorder %s27, %s28
      %p42 = scmp.eq.s32.totalorder %s20, 3
      %p43 = por %p41, %p42
      %p45 = scmp.ne.s32.totalorder %s28, %s44
      %p46 = scmp.eq.s32.totalorder %s20, 0
      %p47 = por %p45, %p46
      %s49 = sadd.s32 %s48, 1
      %p52 = scmp.eq.s32.totalorder %s14, 3
      %p53 = scmp.ne.s32.totalorder %s48, %s50
      %p54 = scmp.eq.s32.totalorder %s14, 0
      %p55 = por %p53, %p54
      %p56 = scmp.ne.s32.totalorder %s48, %s50
      %p57 = scmp.eq.s32.totalorder %s19, 3
      %p58 = por %p56, %p57
      %p59 = scmp.ne.s32.totalorder %s50, %s51
      %p60 = scmp.eq.s32.totalorder %s19, 0
      %p61 = por %p59, %p60
      %p62 = scmp.ne.s32.totalorder %s50, %s51
      %p63 = scmp.eq.s32.totalorder %s20, 3
      %p64 = por %p62, %p63
      %p66 = scmp.ne.s32.totalorder %s51, %s65
      %p67 = scmp.eq.s32.totalorder %s20, 0
      %p68 = por %p66, %p67
      %s70 = sadd.s32 %s69, 1
      %p73 = scmp.eq.s32.totalorder %s14, 3
      %p74 = scmp.ne.s32.totalorder %s69, %s71
      %p75 = scmp.eq.s32.totalorder %s14, 0
      %p76 = por %p74, %p75
      %p77 = scmp.ne.s32.totalorder %s69, %s71
      %p78 = scmp.eq.s32.totalorder %s19, 3
      %p79 = por %p77, %p78
      %p80 = scmp.ne.s32.totalorder %s71, %s72
      %p81 = scmp.eq.s32.totalorder %s19, 0
      %p82 = por %p80, %p81
      %p83 = scmp.ne.s32.totalorder %s71, %s72
      %p84 = scmp.eq.s32.totalorder %s20, 3
      %p85 = por %p83, %p84
      %p87 = scmp.ne.s32.totalorder %s72, %s86
      %p88 = scmp.eq.s32.totalorder %s20, 0
      %p89 = por %p87, %p88
      %s91 = sadd.s32 %s90, 1
      %p94 = scmp.eq.s32.totalorder %s14, 3
      %p95 = scmp.ne.s32.totalorder %s90, %s92
      %p96 = scmp.eq.s32.totalorder %s14, 0
      %p97 = por %p95, %p96
      %p98 = scmp.ne.s32.totalorder %s90, %s92
      %p99 = scmp.eq.s32.totalorder %s19, 3
      %p100 = por %p98, %p99
      %p101 = scmp.ne.s32.totalorder %s92, %s93
      %p102 = scmp.eq.s32.totalorder %s19, 0
      %p103 = por %p101, %p102
      %p104 = scmp.ne.s32.totalorder %s92, %s93
      %p105 = scmp.eq.s32.totalorder %s20, 3
      %p106 = por %p104, %p105
      %p108 = scmp.ne.s32.totalorder %s93, %s107
      %p109 = scmp.eq.s32.totalorder %s20, 0
      %p110 = por %p108, %p109
      %s112 = sadd.s32 %s111, 1
      %p115 = scmp.eq.s32.totalorder %s14, 3
      %p116 = scmp.ne.s32.totalorder %s111, %s113
      %p117 = scmp.eq.s32.totalorder %s14, 0
      %p118 = por %p116, %p117
      %p119 = scmp.ne.s32.totalorder %s111, %s113
      %p120 = scmp.eq.s32.totalorder %s19, 3
      %p121 = por %p119, %p120
      %p122 = scmp.ne.s32.totalorder %s113, %s114
      %p123 = scmp.eq.s32.totalorder %s19, 0
      %p124 = por %p122, %p123
      %p125 = scmp.ne.s32.totalorder %s113, %s114
      %p126 = scmp.eq.s32.totalorder %s20, 3
      %p127 = por %p125, %p126
      %p129 = scmp.ne.s32.totalorder %s114, %s128
      %p130 = scmp.eq.s32.totalorder %s20, 0
      %p131 = por %p129, %p130
      %s132 = ssub.s32 %s14, %s21
      %p133 = scmp.eq.s32.totalorder %s132, 0
      %s135 = sadd.s32 %s134, 1
      %s136 = scalar_select %p133, %s134, %s135
      %p139 = pneg %p133
      %p140 = scmp.eq.s32.totalorder %s14, 3
      %p141 = por %p139, %p140
      %p142 = scmp.ne.s32.totalorder %s134, %s137
      %p143 = scmp.eq.s32.totalorder %s14, 0
      %p144 = por %p142, %p143
      %p145 = scmp.ne.s32.totalorder %s134, %s137
      %p146 = scmp.eq.s32.totalorder %s19, 3
      %p147 = por %p145, %p146
      %p148 = scmp.ne.s32.totalorder %s137, %s138
      %p149 = scmp.eq.s32.totalorder %s19, 0
      %p150 = por %p148, %p149
      %p151 = scmp.ne.s32.totalorder %s137, %s138
      %p152 = scmp.eq.s32.totalorder %s20, 3
      %p153 = por %p151, %p152
      %p155 = scmp.ne.s32.totalorder %s138, %s154
      %p156 = scmp.eq.s32.totalorder %s20, 0
      %p157 = por %p155, %p156
      %p158 = scmp.le.s32.totalorder 1, %s14
      %p159 = scmp.lt.s32.totalorder %s14, 5
      %p160 = pnand %p158, %p159
      %p161 = pneg %p160
      // Predicated region
      $region9: #{tpu_custom_call.1} parent=5 // pred_check
        _
      $region10: #{tpu_custom_call.1} parent=5 // pred_check_branch
        %163 = sbr.rel (%p160) target = $region12
      $region11: #{tpu_custom_call.1} parent=5 // pred_region
        %s164 = ssub.s32 %s14, 1
        // Predicated region
        $region13: #{tpu_custom_call.1} parent=11 // pred_check
          %p165 = pneg %p61
        $region14: #{tpu_custom_call.1} parent=11 // pred_check_branch
          %167 = sbr.rel (%p165) target = $region16
        $region15: #{tpu_custom_call.1} parent=11 // pred_region
          _
        $region16: #{tpu_custom_call.1} parent=11 // pred_fallthru
          _
        // Predicated region
        $region17: #{tpu_custom_call.1} parent=11 // pred_check
          %p168 = pneg %p82
        $region18: #{tpu_custom_call.1} parent=11 // pred_check_branch
          %170 = sbr.rel (%p168) target = $region20
        $region19: #{tpu_custom_call.1} parent=11 // pred_region
          _
        $region20: #{tpu_custom_call.1} parent=11 // pred_fallthru
          _
        // Predicated region
        $region21: #{tpu_custom_call.1} parent=11 // pred_check
          %p171 = pneg %p103
        $region22: #{tpu_custom_call.1} parent=11 // pred_check_branch
          %173 = sbr.rel (%p171) target = $region24
        $region23: #{tpu_custom_call.1} parent=11 // pred_region
          _
        $region24: #{tpu_custom_call.1} parent=11 // pred_fallthru
          _
        // Predicated region
        $region25: #{tpu_custom_call.1} parent=11 // pred_check
          %p174 = pneg %p124
        $region26: #{tpu_custom_call.1} parent=11 // pred_check_branch
          %176 = sbr.rel (%p174) target = $region28
        $region27: #{tpu_custom_call.1} parent=11 // pred_region
          _
        $region28: #{tpu_custom_call.1} parent=11 // pred_fallthru
          _
      $region12: #{tpu_custom_call.1} parent=5 // pred_fallthru
        _
      %p177 = scmp.lt.s32.totalorder %s14, 4
      // Predicated region
      $region29: #{tpu_custom_call.1} parent=5 // pred_check
        %p178 = pneg %p177
      $region30: #{tpu_custom_call.1} parent=5 // pred_check_branch
        %180 = sbr.rel (%p178) target = $region32
      $region31: #{tpu_custom_call.1} parent=5 // pred_region
        // Predicated region
        $region33: #{tpu_custom_call.1} parent=31 // pred_check
          %p181 = pneg %p34
        $region34: #{tpu_custom_call.1} parent=31 // pred_check_branch
          %183 = sbr.rel (%p181) target = $region36
        $region35: #{tpu_custom_call.1} parent=31 // pred_region
          %s184 = smul.u32 32, %s14
          %s185 = ssub.s32 125, %s184
          %p186 = scmp.lt.s32.totalorder %s185, 32
          %s187 = scalar_select %p186, %s185, 32
          %s188 = smul.u32 128, %s187
          %p189 = scmp.lt.s32.totalorder %s184, 124
          %s190 = scalar_select %p189, %s184, 124
          %s191 = smul.addr %s190, 8
          %s192 = scalar_lea.vmem %s0, %s191
          %s193 = smul.u32 32, %s14
          %s194 = ssub.s32 125, %s193
          %p195 = scmp.lt.s32.totalorder %s194, 32
          %s196 = scalar_select %p195, %s194, 32
          %s197 = smul.u32 128, %s196
        $region36: #{tpu_custom_call.1} parent=31 // pred_fallthru
          _
      $region32: #{tpu_custom_call.1} parent=5 // pred_fallthru
        _
      %p198 = scmp.le.s32.totalorder 1, %s14
      %p199 = scmp.lt.s32.totalorder %s14, 5
      %p200 = pnand %p198, %p199
      %p201 = pneg %p200
      // Predicated region
      $region37: #{tpu_custom_call.1} parent=5 // pred_check
        _
      $region38: #{tpu_custom_call.1} parent=5 // pred_check_branch
        %203 = sbr.rel (%p200) target = $region40
      $region39: #{tpu_custom_call.1} parent=5 // pred_region
        %s204 = ssub.s32 %s14, 1
        %s205 = smul.u32 32, %s19
        %s206 = ssub.s32 125, %s205
        %p207 = scmp.lt.s32.totalorder %s206, 32
        %s208 = scalar_select %p207, %s206, 32
        %s209 = smul.u32 128, %s208
        %p210 = scmp.lt.s32.totalorder %s205, 124
        %s211 = scalar_select %p210, %s205, 124
        %s212 = smul.addr %s211, 8
        %s213 = scalar_lea.vmem %s0, %s212
        %p214 = pneg %p40
        %p215 = pneg %p37
        %p216 = pneg %p61
        %p217 = pneg %p58
        %p218 = pneg %p82
        %p219 = pneg %p79
        %p220 = pneg %p103
        %p221 = pneg %p100
        %p222 = pneg %p124
        %p223 = pneg %p121
        %p224 = pneg %p150
        %p225 = pneg %p147
        %s226 = sand.u32 %s137, 1
        %s227 = scalar_lea.sflag [#allocation3], %s226
        %s228 = sand.u32 %s137, 1
        %s229 = smul.addr %s228, 512
        %s230 = scalar_lea.vmem [#allocation2], %s229
        %s231 = smul.u32 32, %s19
        %s232 = ssub.s32 125, %s231
        %p233 = scmp.lt.s32.totalorder %s232, 32
        %s234 = scalar_select %p233, %s232, 32
        %s235 = smul.u32 128, %s234
        %p236 = scmp.lt.s32.totalorder %s231, 124
        %s237 = scalar_select %p236, %s231, 124
        %s238 = smul.addr %s237, 8
        %s239 = scalar_lea.vmem %s0, %s238
        %s240 = smul.u32 32, %s19
        %s241 = ssub.s32 125, %s240
        %p242 = scmp.lt.s32.totalorder %s241, 32
        %s243 = scalar_select %p242, %s241, 32
        %s244 = smul.u32 128, %s243
        %s245 = smul.u32 32, %s19
        %s246 = ssub.s32 125, %s245
        %p247 = scmp.lt.s32.totalorder %s246, 32
        %s248 = scalar_select %p247, %s246, 32
        %s249 = smul.u32 128, %s248
        %s250 = smul.u32 %s249, 2
        %v252 = vld [vmem:[%s239] sm:$0xff]
        %v253 = vld [vmem:[%s239 + $0x8] sm:$0xff]
        %v254 = vld [vmem:[%s239 + $0x10] sm:$0xff]
        %v255 = vld [vmem:[%s239 + $0x18] sm:$0xff]
        %v256 = vld [vmem:[%s239 + $0x20] sm:$0xff]
        %v257 = vld [vmem:[%s239 + $0x28] sm:$0xff]
        %v258 = vld [vmem:[%s239 + $0x30] sm:$0xff]
        %v259 = vld [vmem:[%s239 + $0x38] sm:$0xff]
        %v260 = vld [vmem:[%s239 + $0x40] sm:$0xff]
        %v261 = vld [vmem:[%s239 + $0x48] sm:$0xff]
        %v262 = vld [vmem:[%s239 + $0x50] sm:$0xff]
        %v263 = vld [vmem:[%s239 + $0x58] sm:$0xff]
        %v264 = vld [vmem:[%s239 + $0x60] sm:$0xff]
        %v265 = vld [vmem:[%s239 + $0x68] sm:$0xff]
        %v266 = vld [vmem:[%s239 + $0x70] sm:$0xff]
        %v267 = vld [vmem:[%s239 + $0x78] sm:$0xff]
        %v268 = vld [vmem:[%s239 + $0x80] sm:$0xff]
        %v269 = vld [vmem:[%s239 + $0x88] sm:$0xff]
        %v270 = vld [vmem:[%s239 + $0x90] sm:$0xff]
        %v271 = vld [vmem:[%s239 + $0x98] sm:$0xff]
        %v272 = vld [vmem:[%s239 + $0xa0] sm:$0xff]
        %v273 = vld [vmem:[%s239 + $0xa8] sm:$0xff]
        %v274 = vld [vmem:[%s239 + $0xb0] sm:$0xff]
        %v275 = vld [vmem:[%s239 + $0xb8] sm:$0xff]
        %v276 = vld [vmem:[%s239 + $0xc0] sm:$0xff]
        %v277 = vld [vmem:[%s239 + $0xc8] sm:$0xff]
        %v278 = vld [vmem:[%s239 + $0xd0] sm:$0xff]
        %v279 = vld [vmem:[%s239 + $0xd8] sm:$0xff]
        %v280 = vld [vmem:[%s239 + $0xe0] sm:$0xff]
        %v281 = vld [vmem:[%s239 + $0xe8] sm:$0xff]
        %v282 = vld [vmem:[%s239 + $0xf0] sm:$0xff]
        %v283 = vld [vmem:[%s239 + $0xf8] sm:$0xff]
        %v284 = vpack.c.bf16 %v253, %v252
        %v285 = vpack.c.bf16 %v255, %v254
        %v286 = vpack.c.bf16 %v257, %v256
        %v287 = vpack.c.bf16 %v259, %v258
        %v288 = vpack.c.bf16 %v261, %v260
        %v289 = vpack.c.bf16 %v263, %v262
        %v290 = vpack.c.bf16 %v265, %v264
        %v291 = vpack.c.bf16 %v267, %v266
        %v292 = vpack.c.bf16 %v269, %v268
        %v293 = vpack.c.bf16 %v271, %v270
        %v294 = vpack.c.bf16 %v273, %v272
        %v295 = vpack.c.bf16 %v275, %v274
        %v296 = vpack.c.bf16 %v277, %v276
        %v297 = vpack.c.bf16 %v279, %v278
        %v298 = vpack.c.bf16 %v281, %v280
        %v299 = vpack.c.bf16 %v283, %v282
        %v300 = vld [vmem:[%s1] sm:$0xff]
        %v301 = vld [vmem:[%s1 + $0x8] sm:$0xff]
        %v302 = vld [vmem:[%s1 + $0x10] sm:$0xff]
        %v303 = vld [vmem:[%s1 + $0x18] sm:$0xff]
        %v304 = vld [vmem:[%s2] sm:$0xf]
        %v306 = vlaneseq
        %v307 = vshrl.u32 %v306, 7
        %v308 = vsub.s32 0, %v307
        %v309 = vrot.slane %v304, %v308
        %v310 = vlaneseq
        %v311 = vshrl.u32 %v310, 7
        %v312 = vsub.s32 1, %v311
        %v313 = vrot.slane %v304, %v312
        %v314 = vlaneseq
        %v315 = vshrl.u32 %v314, 7
        %v316 = vsub.s32 2, %v315
        %v317 = vrot.slane %v304, %v316
        %v318 = vlaneseq
        %v319 = vshrl.u32 %v318, 7
        %v320 = vsub.s32 3, %v319
        %v321 = vrot.slane %v304, %v320
        %v330 = vunpack.c.l.b16 %v300
        %v331 = vunpack.c.h.b16 %v300
        %v332 = vunpack.c.l.b16 %v301
        %v333 = vunpack.c.h.b16 %v301
        %v334 = vunpack.c.l.b16 %v302
        %v335 = vunpack.c.h.b16 %v302
        %v336 = vunpack.c.l.b16 %v303
        %v337 = vunpack.c.h.b16 %v303
        %v338 = vpack.c.b16 %v334, %v330
        %v339 = vpack.c.b16 %v335, %v331
        %v340 = vpack.c.b16 %v336, %v332
        %v341 = vpack.c.b16 %v337, %v333
        %vm346 = vcmask 130048
        %v348 = vsel %vm346, %v284, 0
        %v351 = vsel %vm346, %v285, 0
        %v354 = vsel %vm346, %v286, 0
        %v357 = vsel %vm346, %v287, 0
        %v360 = vsel %vm346, %v288, 0
        %v363 = vsel %vm346, %v289, 0
        %v366 = vsel %vm346, %v290, 0
        %v369 = vsel %vm346, %v291, 0
        %v372 = vsel %vm346, %v292, 0
        %v375 = vsel %vm346, %v293, 0
        %v378 = vsel %vm346, %v294, 0
        %v381 = vsel %vm346, %v295, 0
        %v384 = vsel %vm346, %v296, 0
        %v387 = vsel %vm346, %v297, 0
        %v390 = vsel %vm346, %v298, 0
        %v393 = vsel %vm346, %v299, 0
        %395 = vmatprep.subr.bf16.mxu0 %v339
        %396 = vmatpush1.bf16.msra.mxu0 %v338
        %397 = vmatprep.subr.bf16.mxu0 0
        %398 = vmatpush1.bf16.msra.mxu0 0
        %399 = vmatprep.subr.bf16.mxu0 0
        %400 = vmatpush1.bf16.msra.mxu0 0
        %401 = vmatprep.subr.bf16.mxu0 0
        %402 = vmatpush1.bf16.msra.mxu0 0
        %403 = vmatprep.subr.bf16.mxu0 0
        %404 = vmatpush1.bf16.msra.mxu0 0
        %405 = vmatprep.subr.bf16.mxu0 0
        %406 = vmatpush1.bf16.msra.mxu0 0
        %407 = vmatprep.subr.bf16.mxu0 0
        %408 = vmatpush1.bf16.msra.mxu0 0
        %409 = vmatprep.subr.bf16.mxu0 0
        %410 = vmatpush1.bf16.msra.mxu0 0
        %411 = vmatprep.subr.bf16.mxu0 0
        %412 = vmatpush1.bf16.msra.mxu0 0
        %413 = vmatprep.subr.bf16.mxu0 0
        %414 = vmatpush1.bf16.msra.mxu0 0
        %415 = vmatprep.subr.bf16.mxu0 0
        %416 = vmatpush1.bf16.msra.mxu0 0
        %417 = vmatprep.subr.bf16.mxu0 0
        %418 = vmatpush1.bf16.msra.mxu0 0
        %419 = vmatprep.subr.bf16.mxu0 0
        %420 = vmatpush1.bf16.msra.mxu0 0
        %421 = vmatprep.subr.bf16.mxu0 0
        %422 = vmatpush1.bf16.msra.mxu0 0
        %423 = vmatprep.subr.bf16.mxu0 0
        %424 = vmatpush1.bf16.msra.mxu0 0
        %425 = vmatprep.subr.bf16.mxu0 0
        %426 = vmatpush1.bf16.msra.mxu0 0
        %427 = vmatprep.mubr.bf16.mxu0 0
        %428 = vmatmul.mubr.bf16.gmra.mrb[0].mxu0 %v348
        %v429 = vpop.f32.mrb[0].mxu0
        %v430 = vadd.f32 %v309, %v429
        %v431 = vpop.f32.mrb[0].mxu0
        %v432 = vadd.f32 %v313, %v431
        %v433 = vpop.f32.mrb[0].mxu0
        %v434 = vadd.f32 %v309, %v433
        %v435 = vpop.f32.mrb[0].mxu0
        %v436 = vadd.f32 %v313, %v435
        %437 = vmatprep.mubr.bf16.mxu0 0
        %438 = vmatmul.mubr.bf16.gmra.mrb[0].mxu0 %v351
        %v439 = vpop.f32.mrb[0].mxu0
        %v440 = vadd.f32 %v309, %v439
        %v441 = vpop.f32.mrb[0].mxu0
        %v442 = vadd.f32 %v313, %v441
        %v443 = vpop.f32.mrb[0].mxu0
        %v444 = vadd.f32 %v309, %v443
        %v445 = vpop.f32.mrb[0].mxu0
        %v446 = vadd.f32 %v313, %v445
        %447 = vmatprep.mubr.bf16.mxu0 0
        %448 = vmatmul.mubr.bf16.gmra.mrb[0].mxu0 %v354
        %v449 = vpop.f32.mrb[0].mxu0
        %v450 = vadd.f32 %v309, %v449
        %v451 = vpop.f32.mrb[0].mxu0
        %v452 = vadd.f32 %v313, %v451
        %v453 = vpop.f32.mrb[0].mxu0
        %v454 = vadd.f32 %v309, %v453
        %v455 = vpop.f32.mrb[0].mxu0
        %v456 = vadd.f32 %v313, %v455
        %457 = vmatprep.mubr.bf16.mxu0 0
        %458 = vmatmul.mubr.bf16.gmra.mrb[0].mxu0 %v357
        %v459 = vpop.f32.mrb[0].mxu0
        %v460 = vadd.f32 %v309, %v459
        %v461 = vpop.f32.mrb[0].mxu0
        %v462 = vadd.f32 %v313, %v461
        %v463 = vpop.f32.mrb[0].mxu0
        %v464 = vadd.f32 %v309, %v463
        %v465 = vpop.f32.mrb[0].mxu0
        %v466 = vadd.f32 %v313, %v465
        %467 = vmatprep.mubr.bf16.mxu0 0
        %468 = vmatmul.mubr.bf16.gmra.mrb[0].mxu0 %v360
        %v469 = vpop.f32.mrb[0].mxu0
        %v470 = vadd.f32 %v309, %v469
        %v471 = vpop.f32.mrb[0].mxu0
        %v472 = vadd.f32 %v313, %v471
        %v473 = vpop.f32.mrb[0].mxu0
        %v474 = vadd.f32 %v309, %v473
        %v475 = vpop.f32.mrb[0].mxu0
        %v476 = vadd.f32 %v313, %v475
        %477 = vmatprep.mubr.bf16.mxu0 0
        %478 = vmatmul.mubr.bf16.gmra.mrb[0].mxu0 %v363
        %v479 = vpop.f32.mrb[0].mxu0
        %v480 = vadd.f32 %v309, %v479
        %v481 = vpop.f32.mrb[0].mxu0
        %v482 = vadd.f32 %v313, %v481
        %v483 = vpop.f32.mrb[0].mxu0
        %v484 = vadd.f32 %v309, %v483
        %v485 = vpop.f32.mrb[0].mxu0
        %v486 = vadd.f32 %v313, %v485
        %487 = vmatprep.mubr.bf16.mxu0 0
        %488 = vmatmul.mubr.bf16.gmra.mrb[0].mxu0 %v366
        %v489 = vpop.f32.mrb[0].mxu0
        %v490 = vadd.f32 %v309, %v489
        %v491 = vpop.f32.mrb[0].mxu0
        %v492 = vadd.f32 %v313, %v491
        %v493 = vpop.f32.mrb[0].mxu0
        %v494 = vadd.f32 %v309, %v493
        %v495 = vpop.f32.mrb[0].mxu0
        %v496 = vadd.f32 %v313, %v495
        %497 = vmatprep.mubr.bf16.mxu0 0
        %498 = vmatmul.mubr.bf16.gmra.mrb[0].mxu0 %v369
        %v499 = vpop.f32.mrb[0].mxu0
        %v500 = vadd.f32 %v309, %v499
        %v501 = vpop.f32.mrb[0].mxu0
        %v502 = vadd.f32 %v313, %v501
        %v503 = vpop.f32.mrb[0].mxu0
        %v504 = vadd.f32 %v309, %v503
        %v505 = vpop.f32.mrb[0].mxu0
        %v506 = vadd.f32 %v313, %v505
        %507 = vmatprep.mubr.bf16.mxu0 0
        %508 = vmatmul.mubr.bf16.gmra.mrb[0].mxu0 %v372
        %v509 = vpop.f32.mrb[0].mxu0
        %v510 = vadd.f32 %v309, %v509
        %v511 = vpop.f32.mrb[0].mxu0
        %v512 = vadd.f32 %v313, %v511
        %v513 = vpop.f32.mrb[0].mxu0
        %v514 = vadd.f32 %v309, %v513
        %v515 = vpop.f32.mrb[0].mxu0
        %v516 = vadd.f32 %v313, %v515
        %517 = vmatprep.mubr.bf16.mxu0 0
        %518 = vmatmul.mubr.bf16.gmra.mrb[0].mxu0 %v375
        %v519 = vpop.f32.mrb[0].mxu0
        %v520 = vadd.f32 %v309, %v519
        %v521 = vpop.f32.mrb[0].mxu0
        %v522 = vadd.f32 %v313, %v521
        %v523 = vpop.f32.mrb[0].mxu0
        %v524 = vadd.f32 %v309, %v523
        %v525 = vpop.f32.mrb[0].mxu0
        %v526 = vadd.f32 %v313, %v525
        %527 = vmatprep.mubr.bf16.mxu0 0
        %528 = vmatmul.mubr.bf16.gmra.mrb[0].mxu0 %v378
        %v529 = vpop.f32.mrb[0].mxu0
        %v530 = vadd.f32 %v309, %v529
        %v531 = vpop.f32.mrb[0].mxu0
        %v532 = vadd.f32 %v313, %v531
        %v533 = vpop.f32.mrb[0].mxu0
        %v534 = vadd.f32 %v309, %v533
        %v535 = vpop.f32.mrb[0].mxu0
        %v536 = vadd.f32 %v313, %v535
        %537 = vmatprep.mubr.bf16.mxu0 0
        %538 = vmatmul.mubr.bf16.gmra.mrb[0].mxu0 %v381
        %v539 = vpop.f32.mrb[0].mxu0
        %v540 = vadd.f32 %v309, %v539
        %v541 = vpop.f32.mrb[0].mxu0
        %v542 = vadd.f32 %v313, %v541
        %v543 = vpop.f32.mrb[0].mxu0
        %v544 = vadd.f32 %v309, %v543
        %v545 = vpop.f32.mrb[0].mxu0
        %v546 = vadd.f32 %v313, %v545
        %547 = vmatprep.mubr.bf16.mxu0 0
        %548 = vmatmul.mubr.bf16.gmra.mrb[0].mxu0 %v384
        %v549 = vpop.f32.mrb[0].mxu0
        %v550 = vadd.f32 %v309, %v549
        %v551 = vpop.f32.mrb[0].mxu0
        %v552 = vadd.f32 %v313, %v551
        %v553 = vpop.f32.mrb[0].mxu0
        %v554 = vadd.f32 %v309, %v553
        %v555 = vpop.f32.mrb[0].mxu0
        %v556 = vadd.f32 %v313, %v555
        %557 = vmatprep.mubr.bf16.mxu0 0
        %558 = vmatmul.mubr.bf16.gmra.mrb[0].mxu0 %v387
        %v559 = vpop.f32.mrb[0].mxu0
        %v560 = vadd.f32 %v309, %v559
        %v561 = vpop.f32.mrb[0].mxu0
        %v562 = vadd.f32 %v313, %v561
        %v563 = vpop.f32.mrb[0].mxu0
        %v564 = vadd.f32 %v309, %v563
        %v565 = vpop.f32.mrb[0].mxu0
        %v566 = vadd.f32 %v313, %v565
        %567 = vmatprep.mubr.bf16.mxu0 0
        %568 = vmatmul.mubr.bf16.gmra.mrb[0].mxu0 %v390
        %v569 = vpop.f32.mrb[0].mxu0
        %v570 = vadd.f32 %v309, %v569
        %v571 = vpop.f32.mrb[0].mxu0
        %v572 = vadd.f32 %v313, %v571
        %v573 = vpop.f32.mrb[0].mxu0
        %v574 = vadd.f32 %v309, %v573
        %v575 = vpop.f32.mrb[0].mxu0
        %v576 = vadd.f32 %v313, %v575
        %577 = vmatprep.mubr.bf16.mxu0 0
        %578 = vmatmul.mubr.bf16.gmra.mrb[0].mxu0 %v393
        %v579 = vpop.f32.mrb[0].mxu0
        %v580 = vadd.f32 %v309, %v579
        %v581 = vpop.f32.mrb[0].mxu0
        %v582 = vadd.f32 %v313, %v581
        %v583 = vpop.f32.mrb[0].mxu0
        %v584 = vadd.f32 %v309, %v583
        %v585 = vpop.f32.mrb[0].mxu0
        %v586 = vadd.f32 %v313, %v585
        %587 = vdwg.mxu0
        %588 = vmatprep.subr.bf16.mxu0 %v341
        %589 = vmatpush1.bf16.msra.mxu0 %v340
        %590 = vmatprep.subr.bf16.mxu0 0
        %591 = vmatpush1.bf16.msra.mxu0 0
        %592 = vmatprep.subr.bf16.mxu0 0
        %593 = vmatpush1.bf16.msra.mxu0 0
        %594 = vmatprep.subr.bf16.mxu0 0
        %595 = vmatpush1.bf16.msra.mxu0 0
        %596 = vmatprep.subr.bf16.mxu0 0
        %597 = vmatpush1.bf16.msra.mxu0 0
        %598 = vmatprep.subr.bf16.mxu0 0
        %599 = vmatpush1.bf16.msra.mxu0 0
        %600 = vmatprep.subr.bf16.mxu0 0
        %601 = vmatpush1.bf16.msra.mxu0 0
        %602 = vmatprep.subr.bf16.mxu0 0
        %603 = vmatpush1.bf16.msra.mxu0 0
        %604 = vmatprep.subr.bf16.mxu0 0
        %605 = vmatpush1.bf16.msra.mxu0 0
        %606 = vmatprep.subr.bf16.mxu0 0
        %607 = vmatpush1.bf16.msra.mxu0 0
        %608 = vmatprep.subr.bf16.mxu0 0
        %609 = vmatpush1.bf16.msra.mxu0 0
        %610 = vmatprep.subr.bf16.mxu0 0
        %611 = vmatpush1.bf16.msra.mxu0 0
        %612 = vmatprep.subr.bf16.mxu0 0
        %613 = vmatpush1.bf16.msra.mxu0 0
        %614 = vmatprep.subr.bf16.mxu0 0
        %615 = vmatpush1.bf16.msra.mxu0 0
        %616 = vmatprep.subr.bf16.mxu0 0
        %617 = vmatpush1.bf16.msra.mxu0 0
        %618 = vmatprep.subr.bf16.mxu0 0
        %619 = vmatpush1.bf16.msra.mxu0 0
        %620 = vmatprep.mubr.bf16.mxu0 0
        %621 = vmatmul.mubr.bf16.gmra.mrb[0].mxu0 %v348
        %v622 = vpop.f32.mrb[0].mxu0
        %v623 = vadd.f32 %v317, %v622
        %v624 = vpop.f32.mrb[0].mxu0
        %v625 = vadd.f32 %v321, %v624
        %v626 = vpop.f32.mrb[0].mxu0
        %v627 = vadd.f32 %v317, %v626
        %v628 = vpop.f32.mrb[0].mxu0
        %v629 = vadd.f32 %v321, %v628
        %630 = vmatprep.mubr.bf16.mxu0 0
        %631 = vmatmul.mubr.bf16.gmra.mrb[0].mxu0 %v351
        %v632 = vpop.f32.mrb[0].mxu0
        %v633 = vadd.f32 %v317, %v632
        %v634 = vpop.f32.mrb[0].mxu0
        %v635 = vadd.f32 %v321, %v634
        %v636 = vpop.f32.mrb[0].mxu0
        %v637 = vadd.f32 %v317, %v636
        %v638 = vpop.f32.mrb[0].mxu0
        %v639 = vadd.f32 %v321, %v638
        %640 = vmatprep.mubr.bf16.mxu0 0
        %641 = vmatmul.mubr.bf16.gmra.mrb[0].mxu0 %v354
        %v642 = vpop.f32.mrb[0].mxu0
        %v643 = vadd.f32 %v317, %v642
        %v644 = vpop.f32.mrb[0].mxu0
        %v645 = vadd.f32 %v321, %v644
        %v646 = vpop.f32.mrb[0].mxu0
        %v647 = vadd.f32 %v317, %v646
        %v648 = vpop.f32.mrb[0].mxu0
        %v649 = vadd.f32 %v321, %v648
        %650 = vmatprep.mubr.bf16.mxu0 0
        %651 = vmatmul.mubr.bf16.gmra.mrb[0].mxu0 %v357
        %v652 = vpop.f32.mrb[0].mxu0
        %v653 = vadd.f32 %v317, %v652
        %v654 = vpop.f32.mrb[0].mxu0
        %v655 = vadd.f32 %v321, %v654
        %v656 = vpop.f32.mrb[0].mxu0
        %v657 = vadd.f32 %v317, %v656
        %v658 = vpop.f32.mrb[0].mxu0
        %v659 = vadd.f32 %v321, %v658
        %660 = vmatprep.mubr.bf16.mxu0 0
        %661 = vmatmul.mubr.bf16.gmra.mrb[0].mxu0 %v360
        %v662 = vpop.f32.mrb[0].mxu0
        %v663 = vadd.f32 %v317, %v662
        %v664 = vpop.f32.mrb[0].mxu0
        %v665 = vadd.f32 %v321, %v664
        %v666 = vpop.f32.mrb[0].mxu0
        %v667 = vadd.f32 %v317, %v666
        %v668 = vpop.f32.mrb[0].mxu0
        %v669 = vadd.f32 %v321, %v668
        %670 = vmatprep.mubr.bf16.mxu0 0
        %671 = vmatmul.mubr.bf16.gmra.mrb[0].mxu0 %v363
        %v672 = vpop.f32.mrb[0].mxu0
        %v673 = vadd.f32 %v317, %v672
        %v674 = vpop.f32.mrb[0].mxu0
        %v675 = vadd.f32 %v321, %v674
        %v676 = vpop.f32.mrb[0].mxu0
        %v677 = vadd.f32 %v317, %v676
        %v678 = vpop.f32.mrb[0].mxu0
        %v679 = vadd.f32 %v321, %v678
        %680 = vmatprep.mubr.bf16.mxu0 0
        %681 = vmatmul.mubr.bf16.gmra.mrb[0].mxu0 %v366
        %v682 = vpop.f32.mrb[0].mxu0
        %v683 = vadd.f32 %v317, %v682
        %v684 = vpop.f32.mrb[0].mxu0
        %v685 = vadd.f32 %v321, %v684
        %v686 = vpop.f32.mrb[0].mxu0
        %v687 = vadd.f32 %v317, %v686
        %v688 = vpop.f32.mrb[0].mxu0
        %v689 = vadd.f32 %v321, %v688
        %690 = vmatprep.mubr.bf16.mxu0 0
        %691 = vmatmul.mubr.bf16.gmra.mrb[0].mxu0 %v369
        %v692 = vpop.f32.mrb[0].mxu0
        %v693 = vadd.f32 %v317, %v692
        %v694 = vpop.f32.mrb[0].mxu0
        %v695 = vadd.f32 %v321, %v694
        %v696 = vpop.f32.mrb[0].mxu0
        %v697 = vadd.f32 %v317, %v696
        %v698 = vpop.f32.mrb[0].mxu0
        %v699 = vadd.f32 %v321, %v698
        %700 = vmatprep.mubr.bf16.mxu0 0
        %701 = vmatmul.mubr.bf16.gmra.mrb[0].mxu0 %v372
        %v702 = vpop.f32.mrb[0].mxu0
        %v703 = vadd.f32 %v317, %v702
        %v704 = vpop.f32.mrb[0].mxu0
        %v705 = vadd.f32 %v321, %v704
        %v706 = vpop.f32.mrb[0].mxu0
        %v707 = vadd.f32 %v317, %v706
        %v708 = vpop.f32.mrb[0].mxu0
        %v709 = vadd.f32 %v321, %v708
        %710 = vmatprep.mubr.bf16.mxu0 0
        %711 = vmatmul.mubr.bf16.gmra.mrb[0].mxu0 %v375
        %v712 = vpop.f32.mrb[0].mxu0
        %v713 = vadd.f32 %v317, %v712
        %v714 = vpop.f32.mrb[0].mxu0
        %v715 = vadd.f32 %v321, %v714
        %v716 = vpop.f32.mrb[0].mxu0
        %v717 = vadd.f32 %v317, %v716
        %v718 = vpop.f32.mrb[0].mxu0
        %v719 = vadd.f32 %v321, %v718
        %720 = vmatprep.mubr.bf16.mxu0 0
        %721 = vmatmul.mubr.bf16.gmra.mrb[0].mxu0 %v378
        %v722 = vpop.f32.mrb[0].mxu0
        %v723 = vadd.f32 %v317, %v722
        %v724 = vpop.f32.mrb[0].mxu0
        %v725 = vadd.f32 %v321, %v724
        %v726 = vpop.f32.mrb[0].mxu0
        %v727 = vadd.f32 %v317, %v726
        %v728 = vpop.f32.mrb[0].mxu0
        %v729 = vadd.f32 %v321, %v728
        %730 = vmatprep.mubr.bf16.mxu0 0
        %731 = vmatmul.mubr.bf16.gmra.mrb[0].mxu0 %v381
        %v732 = vpop.f32.mrb[0].mxu0
        %v733 = vadd.f32 %v317, %v732
        %v734 = vpop.f32.mrb[0].mxu0
        %v735 = vadd.f32 %v321, %v734
        %v736 = vpop.f32.mrb[0].mxu0
        %v737 = vadd.f32 %v317, %v736
        %v738 = vpop.f32.mrb[0].mxu0
        %v739 = vadd.f32 %v321, %v738
        %740 = vmatprep.mubr.bf16.mxu0 0
        %741 = vmatmul.mubr.bf16.gmra.mrb[0].mxu0 %v384
        %v742 = vpop.f32.mrb[0].mxu0
        %v743 = vadd.f32 %v317, %v742
        %v744 = vpop.f32.mrb[0].mxu0
        %v745 = vadd.f32 %v321, %v744
        %v746 = vpop.f32.mrb[0].mxu0
        %v747 = vadd.f32 %v317, %v746
        %v748 = vpop.f32.mrb[0].mxu0
        %v749 = vadd.f32 %v321, %v748
        %750 = vmatprep.mubr.bf16.mxu0 0
        %751 = vmatmul.mubr.bf16.gmra.mrb[0].mxu0 %v387
        %v752 = vpop.f32.mrb[0].mxu0
        %v753 = vadd.f32 %v317, %v752
        %v754 = vpop.f32.mrb[0].mxu0
        %v755 = vadd.f32 %v321, %v754
        %v756 = vpop.f32.mrb[0].mxu0
        %v757 = vadd.f32 %v317, %v756
        %v758 = vpop.f32.mrb[0].mxu0
        %v759 = vadd.f32 %v321, %v758
        %760 = vmatprep.mubr.bf16.mxu0 0
        %761 = vmatmul.mubr.bf16.gmra.mrb[0].mxu0 %v390
        %v762 = vpop.f32.mrb[0].mxu0
        %v763 = vadd.f32 %v317, %v762
        %v764 = vpop.f32.mrb[0].mxu0
        %v765 = vadd.f32 %v321, %v764
        %v766 = vpop.f32.mrb[0].mxu0
        %v767 = vadd.f32 %v317, %v766
        %v768 = vpop.f32.mrb[0].mxu0
        %v769 = vadd.f32 %v321, %v768
        %770 = vmatprep.mubr.bf16.mxu0 0
        %771 = vmatmul.mubr.bf16.gmra.mrb[0].mxu0 %v393
        %v772 = vpop.f32.mrb[0].mxu0
        %v773 = vadd.f32 %v317, %v772
        %v774 = vpop.f32.mrb[0].mxu0
        %v775 = vadd.f32 %v321, %v774
        %v776 = vpop.f32.mrb[0].mxu0
        %v777 = vadd.f32 %v317, %v776
        %v778 = vpop.f32.mrb[0].mxu0
        %v779 = vadd.f32 %v321, %v778
        %780 = vdwg.mxu0
        %v781 = vmul.f32 %v430, 0.1
        %v782 = vmul.f32 %v432, 0.1
        %v783 = vmul.f32 %v623, 0.1
        %v784 = vmul.f32 %v625, 0.1
        %v785 = vmul.f32 %v434, 0.1
        %v786 = vmul.f32 %v436, 0.1
        %v787 = vmul.f32 %v627, 0.1
        %v788 = vmul.f32 %v629, 0.1
        %v789 = vmul.f32 %v440, 0.1
        %v790 = vmul.f32 %v442, 0.1
        %v791 = vmul.f32 %v633, 0.1
        %v792 = vmul.f32 %v635, 0.1
        %v793 = vmul.f32 %v444, 0.1
        %v794 = vmul.f32 %v446, 0.1
        %v795 = vmul.f32 %v637, 0.1
        %v796 = vmul.f32 %v639, 0.1
        %v797 = vmul.f32 %v450, 0.1
        %v798 = vmul.f32 %v452, 0.1
        %v799 = vmul.f32 %v643, 0.1
        %v800 = vmul.f32 %v645, 0.1
        %v801 = vmul.f32 %v454, 0.1
        %v802 = vmul.f32 %v456, 0.1
        %v803 = vmul.f32 %v647, 0.1
        %v804 = vmul.f32 %v649, 0.1
        %v805 = vmul.f32 %v460, 0.1
        %v806 = vmul.f32 %v462, 0.1
        %v807 = vmul.f32 %v653, 0.1
        %v808 = vmul.f32 %v655, 0.1
        %v809 = vmul.f32 %v464, 0.1
        %v810 = vmul.f32 %v466, 0.1
        %v811 = vmul.f32 %v657, 0.1
        %v812 = vmul.f32 %v659, 0.1
        %v813 = vmul.f32 %v470, 0.1
        %v814 = vmul.f32 %v472, 0.1
        %v815 = vmul.f32 %v663, 0.1
        %v816 = vmul.f32 %v665, 0.1
        %v817 = vmul.f32 %v474, 0.1
        %v818 = vmul.f32 %v476, 0.1
        %v819 = vmul.f32 %v667, 0.1
        %v820 = vmul.f32 %v669, 0.1
        %v821 = vmul.f32 %v480, 0.1
        %v822 = vmul.f32 %v482, 0.1
        %v823 = vmul.f32 %v673, 0.1
        %v824 = vmul.f32 %v675, 0.1
        %v825 = vmul.f32 %v484, 0.1
        %v826 = vmul.f32 %v486, 0.1
        %v827 = vmul.f32 %v677, 0.1
        %v828 = vmul.f32 %v679, 0.1
        %v829 = vmul.f32 %v490, 0.1
        %v830 = vmul.f32 %v492, 0.1
        %v831 = vmul.f32 %v683, 0.1
        %v832 = vmul.f32 %v685, 0.1
        %v833 = vmul.f32 %v494, 0.1
        %v834 = vmul.f32 %v496, 0.1
        %v835 = vmul.f32 %v687, 0.1
        %v836 = vmul.f32 %v689, 0.1
        %v837 = vmul.f32 %v500, 0.1
        %v838 = vmul.f32 %v502, 0.1
        %v839 = vmul.f32 %v693, 0.1
        %v840 = vmul.f32 %v695, 0.1
        %v841 = vmul.f32 %v504, 0.1
        %v842 = vmul.f32 %v506, 0.1
        %v843 = vmul.f32 %v697, 0.1
        %v844 = vmul.f32 %v699, 0.1
        %v845 = vmul.f32 %v510, 0.1
        %v846 = vmul.f32 %v512, 0.1
        %v847 = vmul.f32 %v703, 0.1
        %v848 = vmul.f32 %v705, 0.1
        %v849 = vmul.f32 %v514, 0.1
        %v850 = vmul.f32 %v516, 0.1
        %v851 = vmul.f32 %v707, 0.1
        %v852 = vmul.f32 %v709, 0.1
        %v853 = vmul.f32 %v520, 0.1
        %v854 = vmul.f32 %v522, 0.1
        %v855 = vmul.f32 %v713, 0.1
        %v856 = vmul.f32 %v715, 0.1
        %v857 = vmul.f32 %v524, 0.1
        %v858 = vmul.f32 %v526, 0.1
        %v859 = vmul.f32 %v717, 0.1
        %v860 = vmul.f32 %v719, 0.1
        %v861 = vmul.f32 %v530, 0.1
        %v862 = vmul.f32 %v532, 0.1
        %v863 = vmul.f32 %v723, 0.1
        %v864 = vmul.f32 %v725, 0.1
        %v865 = vmul.f32 %v534, 0.1
        %v866 = vmul.f32 %v536, 0.1
        %v867 = vmul.f32 %v727, 0.1
        %v868 = vmul.f32 %v729, 0.1
        %v869 = vmul.f32 %v540, 0.1
        %v870 = vmul.f32 %v542, 0.1
        %v871 = vmul.f32 %v733, 0.1
        %v872 = vmul.f32 %v735, 0.1
        %v873 = vmul.f32 %v544, 0.1
        %v874 = vmul.f32 %v546, 0.1
        %v875 = vmul.f32 %v737, 0.1
        %v876 = vmul.f32 %v739, 0.1
        %v877 = vmul.f32 %v550, 0.1
        %v878 = vmul.f32 %v552, 0.1
        %v879 = vmul.f32 %v743, 0.1
        %v880 = vmul.f32 %v745, 0.1
        %v881 = vmul.f32 %v554, 0.1
        %v882 = vmul.f32 %v556, 0.1
        %v883 = vmul.f32 %v747, 0.1
        %v884 = vmul.f32 %v749, 0.1
        %v885 = vmul.f32 %v560, 0.1
        %v886 = vmul.f32 %v562, 0.1
        %v887 = vmul.f32 %v753, 0.1
        %v888 = vmul.f32 %v755, 0.1
        %v889 = vmul.f32 %v564, 0.1
        %v890 = vmul.f32 %v566, 0.1
        %v891 = vmul.f32 %v757, 0.1
        %v892 = vmul.f32 %v759, 0.1
        %v893 = vmul.f32 %v570, 0.1
        %v894 = vmul.f32 %v572, 0.1
        %v895 = vmul.f32 %v763, 0.1
        %v896 = vmul.f32 %v765, 0.1
        %v897 = vmul.f32 %v574, 0.1
        %v898 = vmul.f32 %v576, 0.1
        %v899 = vmul.f32 %v767, 0.1
        %v900 = vmul.f32 %v769, 0.1
        %v901 = vmul.f32 %v580, 0.1
        %v902 = vmul.f32 %v582, 0.1
        %v903 = vmul.f32 %v773, 0.1
        %v904 = vmul.f32 %v775, 0.1
        %v905 = vmul.f32 %v584, 0.1
        %v906 = vmul.f32 %v586, 0.1
        %v907 = vmul.f32 %v777, 0.1
        %v908 = vmul.f32 %v779, 0.1
        %v909 = vsub.f32 %v781, 0.9
        %v910 = vsub.f32 %v782, 0.9
        %v911 = vsub.f32 %v783, 0.9
        %v912 = vsub.f32 %v784, 0.9
        %v913 = vsub.f32 %v785, 0.9
        %v914 = vsub.f32 %v786, 0.9
        %v915 = vsub.f32 %v787, 0.9
        %v916 = vsub.f32 %v788, 0.9
        %v917 = vsub.f32 %v789, 0.9
        %v918 = vsub.f32 %v790, 0.9
        %v919 = vsub.f32 %v791, 0.9
        %v920 = vsub.f32 %v792, 0.9
        %v921 = vsub.f32 %v793, 0.9
        %v922 = vsub.f32 %v794, 0.9
        %v923 = vsub.f32 %v795, 0.9
        %v924 = vsub.f32 %v796, 0.9
        %v925 = vsub.f32 %v797, 0.9
        %v926 = vsub.f32 %v798, 0.9
        %v927 = vsub.f32 %v799, 0.9
        %v928 = vsub.f32 %v800, 0.9
        %v929 = vsub.f32 %v801, 0.9
        %v930 = vsub.f32 %v802, 0.9
        %v931 = vsub.f32 %v803, 0.9
        %v932 = vsub.f32 %v804, 0.9
        %v933 = vsub.f32 %v805, 0.9
        %v934 = vsub.f32 %v806, 0.9
        %v935 = vsub.f32 %v807, 0.9
        %v936 = vsub.f32 %v808, 0.9
        %v937 = vsub.f32 %v809, 0.9
        %v938 = vsub.f32 %v810, 0.9
        %v939 = vsub.f32 %v811, 0.9
        %v940 = vsub.f32 %v812, 0.9
        %v941 = vsub.f32 %v813, 0.9
        %v942 = vsub.f32 %v814, 0.9
        %v943 = vsub.f32 %v815, 0.9
        %v944 = vsub.f32 %v816, 0.9
        %v945 = vsub.f32 %v817, 0.9
        %v946 = vsub.f32 %v818, 0.9
        %v947 = vsub.f32 %v819, 0.9
        %v948 = vsub.f32 %v820, 0.9
        %v949 = vsub.f32 %v821, 0.9
        %v950 = vsub.f32 %v822, 0.9
        %v951 = vsub.f32 %v823, 0.9
        %v952 = vsub.f32 %v824, 0.9
        %v953 = vsub.f32 %v825, 0.9
        %v954 = vsub.f32 %v826, 0.9
        %v955 = vsub.f32 %v827, 0.9
        %v956 = vsub.f32 %v828, 0.9
        %v957 = vsub.f32 %v829, 0.9
        %v958 = vsub.f32 %v830, 0.9
        %v959 = vsub.f32 %v831, 0.9
        %v960 = vsub.f32 %v832, 0.9
        %v961 = vsub.f32 %v833, 0.9
        %v962 = vsub.f32 %v834, 0.9
        %v963 = vsub.f32 %v835, 0.9
        %v964 = vsub.f32 %v836, 0.9
        %v965 = vsub.f32 %v837, 0.9
        %v966 = vsub.f32 %v838, 0.9
        %v967 = vsub.f32 %v839, 0.9
        %v968 = vsub.f32 %v840, 0.9
        %v969 = vsub.f32 %v841, 0.9
        %v970 = vsub.f32 %v842, 0.9
        %v971 = vsub.f32 %v843, 0.9
        %v972 = vsub.f32 %v844, 0.9
        %v973 = vsub.f32 %v845, 0.9
        %v974 = vsub.f32 %v846, 0.9
        %v975 = vsub.f32 %v847, 0.9
        %v976 = vsub.f32 %v848, 0.9
        %v977 = vsub.f32 %v849, 0.9
        %v978 = vsub.f32 %v850, 0.9
        %v979 = vsub.f32 %v851, 0.9
        %v980 = vsub.f32 %v852, 0.9
        %v981 = vsub.f32 %v853, 0.9
        %v982 = vsub.f32 %v854, 0.9
        %v983 = vsub.f32 %v855, 0.9
        %v984 = vsub.f32 %v856, 0.9
        %v985 = vsub.f32 %v857, 0.9
        %v986 = vsub.f32 %v858, 0.9
        %v987 = vsub.f32 %v859, 0.9
        %v988 = vsub.f32 %v860, 0.9
        %v989 = vsub.f32 %v861, 0.9
        %v990 = vsub.f32 %v862, 0.9
        %v991 = vsub.f32 %v863, 0.9
        %v992 = vsub.f32 %v864, 0.9
        %v993 = vsub.f32 %v865, 0.9
        %v994 = vsub.f32 %v866, 0.9
        %v995 = vsub.f32 %v867, 0.9
        %v996 = vsub.f32 %v868, 0.9
        %v997 = vsub.f32 %v869, 0.9
        %v998 = vsub.f32 %v870, 0.9
        %v999 = vsub.f32 %v871, 0.9
        %v1000 = vsub.f32 %v872, 0.9
        %v1001 = vsub.f32 %v873, 0.9
        %v1002 = vsub.f32 %v874, 0.9
        %v1003 = vsub.f32 %v875, 0.9
        %v1004 = vsub.f32 %v876, 0.9
        %v1005 = vsub.f32 %v877, 0.9
        %v1006 = vsub.f32 %v878, 0.9
        %v1007 = vsub.f32 %v879, 0.9
        %v1008 = vsub.f32 %v880, 0.9
        %v1009 = vsub.f32 %v881, 0.9
        %v1010 = vsub.f32 %v882, 0.9
        %v1011 = vsub.f32 %v883, 0.9
        %v1012 = vsub.f32 %v884, 0.9
        %v1013 = vsub.f32 %v885, 0.9
        %v1014 = vsub.f32 %v886, 0.9
        %v1015 = vsub.f32 %v887, 0.9
        %v1016 = vsub.f32 %v888, 0.9
        %v1017 = vsub.f32 %v889, 0.9
        %v1018 = vsub.f32 %v890, 0.9
        %v1019 = vsub.f32 %v891, 0.9
        %v1020 = vsub.f32 %v892, 0.9
        %v1021 = vsub.f32 %v893, 0.9
        %v1022 = vsub.f32 %v894, 0.9
        %v1023 = vsub.f32 %v895, 0.9
        %v1024 = vsub.f32 %v896, 0.9
        %v1025 = vsub.f32 %v897, 0.9
        %v1026 = vsub.f32 %v898, 0.9
        %v1027 = vsub.f32 %v899, 0.9
        %v1028 = vsub.f32 %v900, 0.9
        %v1029 = vsub.f32 %v901, 0.9
        %v1030 = vsub.f32 %v902, 0.9
        %v1031 = vsub.f32 %v903, 0.9
        %v1032 = vsub.f32 %v904, 0.9
        %v1033 = vsub.f32 %v905, 0.9
        %v1034 = vsub.f32 %v906, 0.9
        %v1035 = vsub.f32 %v907, 0.9
        %v1036 = vsub.f32 %v908, 0.9
        %v1037 = vadd.f32 %v781, 0.9
        %v1038 = vadd.f32 %v782, 0.9
        %v1039 = vadd.f32 %v783, 0.9
        %v1040 = vadd.f32 %v784, 0.9
        %v1041 = vadd.f32 %v785, 0.9
        %v1042 = vadd.f32 %v786, 0.9
        %v1043 = vadd.f32 %v787, 0.9
        %v1044 = vadd.f32 %v788, 0.9
        %v1045 = vadd.f32 %v789, 0.9
        %v1046 = vadd.f32 %v790, 0.9
        %v1047 = vadd.f32 %v791, 0.9
        %v1048 = vadd.f32 %v792, 0.9
        %v1049 = vadd.f32 %v793, 0.9
        %v1050 = vadd.f32 %v794, 0.9
        %v1051 = vadd.f32 %v795, 0.9
        %v1052 = vadd.f32 %v796, 0.9
        %v1053 = vadd.f32 %v797, 0.9
        %v1054 = vadd.f32 %v798, 0.9
        %v1055 = vadd.f32 %v799, 0.9
        %v1056 = vadd.f32 %v800, 0.9
        %v1057 = vadd.f32 %v801, 0.9
        %v1058 = vadd.f32 %v802, 0.9
        %v1059 = vadd.f32 %v803, 0.9
        %v1060 = vadd.f32 %v804, 0.9
        %v1061 = vadd.f32 %v805, 0.9
        %v1062 = vadd.f32 %v806, 0.9
        %v1063 = vadd.f32 %v807, 0.9
        %v1064 = vadd.f32 %v808, 0.9
        %v1065 = vadd.f32 %v809, 0.9
        %v1066 = vadd.f32 %v810, 0.9
        %v1067 = vadd.f32 %v811, 0.9
        %v1068 = vadd.f32 %v812, 0.9
        %v1069 = vadd.f32 %v813, 0.9
        %v1070 = vadd.f32 %v814, 0.9
        %v1071 = vadd.f32 %v815, 0.9
        %v1072 = vadd.f32 %v816, 0.9
        %v1073 = vadd.f32 %v817, 0.9
        %v1074 = vadd.f32 %v818, 0.9
        %v1075 = vadd.f32 %v819, 0.9
        %v1076 = vadd.f32 %v820, 0.9
        %v1077 = vadd.f32 %v821, 0.9
        %v1078 = vadd.f32 %v822, 0.9
        %v1079 = vadd.f32 %v823, 0.9
        %v1080 = vadd.f32 %v824, 0.9
        %v1081 = vadd.f32 %v825, 0.9
        %v1082 = vadd.f32 %v826, 0.9
        %v1083 = vadd.f32 %v827, 0.9
        %v1084 = vadd.f32 %v828, 0.9
        %v1085 = vadd.f32 %v829, 0.9
        %v1086 = vadd.f32 %v830, 0.9
        %v1087 = vadd.f32 %v831, 0.9
        %v1088 = vadd.f32 %v832, 0.9
        %v1089 = vadd.f32 %v833, 0.9
        %v1090 = vadd.f32 %v834, 0.9
        %v1091 = vadd.f32 %v835, 0.9
        %v1092 = vadd.f32 %v836, 0.9
        %v1093 = vadd.f32 %v837, 0.9
        %v1094 = vadd.f32 %v838, 0.9
        %v1095 = vadd.f32 %v839, 0.9
        %v1096 = vadd.f32 %v840, 0.9
        %v1097 = vadd.f32 %v841, 0.9
        %v1098 = vadd.f32 %v842, 0.9
        %v1099 = vadd.f32 %v843, 0.9
        %v1100 = vadd.f32 %v844, 0.9
        %v1101 = vadd.f32 %v845, 0.9
        %v1102 = vadd.f32 %v846, 0.9
        %v1103 = vadd.f32 %v847, 0.9
        %v1104 = vadd.f32 %v848, 0.9
        %v1105 = vadd.f32 %v849, 0.9
        %v1106 = vadd.f32 %v850, 0.9
        %v1107 = vadd.f32 %v851, 0.9
        %v1108 = vadd.f32 %v852, 0.9
        %v1109 = vadd.f32 %v853, 0.9
        %v1110 = vadd.f32 %v854, 0.9
        %v1111 = vadd.f32 %v855, 0.9
        %v1112 = vadd.f32 %v856, 0.9
        %v1113 = vadd.f32 %v857, 0.9
        %v1114 = vadd.f32 %v858, 0.9
        %v1115 = vadd.f32 %v859, 0.9
        %v1116 = vadd.f32 %v860, 0.9
        %v1117 = vadd.f32 %v861, 0.9
        %v1118 = vadd.f32 %v862, 0.9
        %v1119 = vadd.f32 %v863, 0.9
        %v1120 = vadd.f32 %v864, 0.9
        %v1121 = vadd.f32 %v865, 0.9
        %v1122 = vadd.f32 %v866, 0.9
        %v1123 = vadd.f32 %v867, 0.9
        %v1124 = vadd.f32 %v868, 0.9
        %v1125 = vadd.f32 %v869, 0.9
        %v1126 = vadd.f32 %v870, 0.9
        %v1127 = vadd.f32 %v871, 0.9
        %v1128 = vadd.f32 %v872, 0.9
        %v1129 = vadd.f32 %v873, 0.9
        %v1130 = vadd.f32 %v874, 0.9
        %v1131 = vadd.f32 %v875, 0.9
        %v1132 = vadd.f32 %v876, 0.9
        %v1133 = vadd.f32 %v877, 0.9
        %v1134 = vadd.f32 %v878, 0.9
        %v1135 = vadd.f32 %v879, 0.9
        %v1136 = vadd.f32 %v880, 0.9
        %v1137 = vadd.f32 %v881, 0.9
        %v1138 = vadd.f32 %v882, 0.9
        %v1139 = vadd.f32 %v883, 0.9
        %v1140 = vadd.f32 %v884, 0.9
        %v1141 = vadd.f32 %v885, 0.9
        %v1142 = vadd.f32 %v886, 0.9
        %v1143 = vadd.f32 %v887, 0.9
        %v1144 = vadd.f32 %v888, 0.9
        %v1145 = vadd.f32 %v889, 0.9
        %v1146 = vadd.f32 %v890, 0.9
        %v1147 = vadd.f32 %v891, 0.9
        %v1148 = vadd.f32 %v892, 0.9
        %v1149 = vadd.f32 %v893, 0.9
        %v1150 = vadd.f32 %v894, 0.9
        %v1151 = vadd.f32 %v895, 0.9
        %v1152 = vadd.f32 %v896, 0.9
        %v1153 = vadd.f32 %v897, 0.9
        %v1154 = vadd.f32 %v898, 0.9
        %v1155 = vadd.f32 %v899, 0.9
        %v1156 = vadd.f32 %v900, 0.9
        %v1157 = vadd.f32 %v901, 0.9
        %v1158 = vadd.f32 %v902, 0.9
        %v1159 = vadd.f32 %v903, 0.9
        %v1160 = vadd.f32 %v904, 0.9
        %v1161 = vadd.f32 %v905, 0.9
        %v1162 = vadd.f32 %v906, 0.9
        %v1163 = vadd.f32 %v907, 0.9
        %v1164 = vadd.f32 %v908, 0.9
        %v1165 = vmin.f32 %v1037, %v430
        %v1166 = vmin.f32 %v1038, %v432
        %v1167 = vmin.f32 %v1039, %v623
        %v1168 = vmin.f32 %v1040, %v625
        %v1169 = vmin.f32 %v1041, %v434
        %v1170 = vmin.f32 %v1042, %v436
        %v1171 = vmin.f32 %v1043, %v627
        %v1172 = vmin.f32 %v1044, %v629
        %v1173 = vmin.f32 %v1045, %v440
        %v1174 = vmin.f32 %v1046, %v442
        %v1175 = vmin.f32 %v1047, %v633
        %v1176 = vmin.f32 %v1048, %v635
        %v1177 = vmin.f32 %v1049, %v444
        %v1178 = vmin.f32 %v1050, %v446
        %v1179 = vmin.f32 %v1051, %v637
        %v1180 = vmin.f32 %v1052, %v639
        %v1181 = vmin.f32 %v1053, %v450
        %v1182 = vmin.f32 %v1054, %v452
        %v1183 = vmin.f32 %v1055, %v643
        %v1184 = vmin.f32 %v1056, %v645
        %v1185 = vmin.f32 %v1057, %v454
        %v1186 = vmin.f32 %v1058, %v456
        %v1187 = vmin.f32 %v1059, %v647
        %v1188 = vmin.f32 %v1060, %v649
        %v1189 = vmin.f32 %v1061, %v460
        %v1190 = vmin.f32 %v1062, %v462
        %v1191 = vmin.f32 %v1063, %v653
        %v1192 = vmin.f32 %v1064, %v655
        %v1193 = vmin.f32 %v1065, %v464
        %v1194 = vmin.f32 %v1066, %v466
        %v1195 = vmin.f32 %v1067, %v657
        %v1196 = vmin.f32 %v1068, %v659
        %v1197 = vmin.f32 %v1069, %v470
        %v1198 = vmin.f32 %v1070, %v472
        %v1199 = vmin.f32 %v1071, %v663
        %v1200 = vmin.f32 %v1072, %v665
        %v1201 = vmin.f32 %v1073, %v474
        %v1202 = vmin.f32 %v1074, %v476
        %v1203 = vmin.f32 %v1075, %v667
        %v1204 = vmin.f32 %v1076, %v669
        %v1205 = vmin.f32 %v1077, %v480
        %v1206 = vmin.f32 %v1078, %v482
        %v1207 = vmin.f32 %v1079, %v673
        %v1208 = vmin.f32 %v1080, %v675
        %v1209 = vmin.f32 %v1081, %v484
        %v1210 = vmin.f32 %v1082, %v486
        %v1211 = vmin.f32 %v1083, %v677
        %v1212 = vmin.f32 %v1084, %v679
        %v1213 = vmin.f32 %v1085, %v490
        %v1214 = vmin.f32 %v1086, %v492
        %v1215 = vmin.f32 %v1087, %v683
        %v1216 = vmin.f32 %v1088, %v685
        %v1217 = vmin.f32 %v1089, %v494
        %v1218 = vmin.f32 %v1090, %v496
        %v1219 = vmin.f32 %v1091, %v687
        %v1220 = vmin.f32 %v1092, %v689
        %v1221 = vmin.f32 %v1093, %v500
        %v1222 = vmin.f32 %v1094, %v502
        %v1223 = vmin.f32 %v1095, %v693
        %v1224 = vmin.f32 %v1096, %v695
        %v1225 = vmin.f32 %v1097, %v504
        %v1226 = vmin.f32 %v1098, %v506
        %v1227 = vmin.f32 %v1099, %v697
        %v1228 = vmin.f32 %v1100, %v699
        %v1229 = vmin.f32 %v1101, %v510
        %v1230 = vmin.f32 %v1102, %v512
        %v1231 = vmin.f32 %v1103, %v703
        %v1232 = vmin.f32 %v1104, %v705
        %v1233 = vmin.f32 %v1105, %v514
        %v1234 = vmin.f32 %v1106, %v516
        %v1235 = vmin.f32 %v1107, %v707
        %v1236 = vmin.f32 %v1108, %v709
        %v1237 = vmin.f32 %v1109, %v520
        %v1238 = vmin.f32 %v1110, %v522
        %v1239 = vmin.f32 %v1111, %v713
        %v1240 = vmin.f32 %v1112, %v715
        %v1241 = vmin.f32 %v1113, %v524
        %v1242 = vmin.f32 %v1114, %v526
        %v1243 = vmin.f32 %v1115, %v717
        %v1244 = vmin.f32 %v1116, %v719
        %v1245 = vmin.f32 %v1117, %v530
        %v1246 = vmin.f32 %v1118, %v532
        %v1247 = vmin.f32 %v1119, %v723
        %v1248 = vmin.f32 %v1120, %v725
        %v1249 = vmin.f32 %v1121, %v534
        %v1250 = vmin.f32 %v1122, %v536
        %v1251 = vmin.f32 %v1123, %v727
        %v1252 = vmin.f32 %v1124, %v729
        %v1253 = vmin.f32 %v1125, %v540
        %v1254 = vmin.f32 %v1126, %v542
        %v1255 = vmin.f32 %v1127, %v733
        %v1256 = vmin.f32 %v1128, %v735
        %v1257 = vmin.f32 %v1129, %v544
        %v1258 = vmin.f32 %v1130, %v546
        %v1259 = vmin.f32 %v1131, %v737
        %v1260 = vmin.f32 %v1132, %v739
        %v1261 = vmin.f32 %v1133, %v550
        %v1262 = vmin.f32 %v1134, %v552
        %v1263 = vmin.f32 %v1135, %v743
        %v1264 = vmin.f32 %v1136, %v745
        %v1265 = vmin.f32 %v1137, %v554
        %v1266 = vmin.f32 %v1138, %v556
        %v1267 = vmin.f32 %v1139, %v747
        %v1268 = vmin.f32 %v1140, %v749
        %v1269 = vmin.f32 %v1141, %v560
        %v1270 = vmin.f32 %v1142, %v562
        %v1271 = vmin.f32 %v1143, %v753
        %v1272 = vmin.f32 %v1144, %v755
        %v1273 = vmin.f32 %v1145, %v564
        %v1274 = vmin.f32 %v1146, %v566
        %v1275 = vmin.f32 %v1147, %v757
        %v1276 = vmin.f32 %v1148, %v759
        %v1277 = vmin.f32 %v1149, %v570
        %v1278 = vmin.f32 %v1150, %v572
        %v1279 = vmin.f32 %v1151, %v763
        %v1280 = vmin.f32 %v1152, %v765
        %v1281 = vmin.f32 %v1153, %v574
        %v1282 = vmin.f32 %v1154, %v576
        %v1283 = vmin.f32 %v1155, %v767
        %v1284 = vmin.f32 %v1156, %v769
        %v1285 = vmin.f32 %v1157, %v580
        %v1286 = vmin.f32 %v1158, %v582
        %v1287 = vmin.f32 %v1159, %v773
        %v1288 = vmin.f32 %v1160, %v775
        %v1289 = vmin.f32 %v1161, %v584
        %v1290 = vmin.f32 %v1162, %v586
        %v1291 = vmin.f32 %v1163, %v777
        %v1292 = vmin.f32 %v1164, %v779
        %v1293 = vmax.f32 %v909, %v1165
        %v1294 = vmax.f32 %v910, %v1166
        %v1295 = vmax.f32 %v911, %v1167
        %v1296 = vmax.f32 %v912, %v1168
        %v1297 = vmax.f32 %v913, %v1169
        %v1298 = vmax.f32 %v914, %v1170
        %v1299 = vmax.f32 %v915, %v1171
        %v1300 = vmax.f32 %v916, %v1172
        %v1301 = vmax.f32 %v917, %v1173
        %v1302 = vmax.f32 %v918, %v1174
        %v1303 = vmax.f32 %v919, %v1175
        %v1304 = vmax.f32 %v920, %v1176
        %v1305 = vmax.f32 %v921, %v1177
        %v1306 = vmax.f32 %v922, %v1178
        %v1307 = vmax.f32 %v923, %v1179
        %v1308 = vmax.f32 %v924, %v1180
        %v1309 = vmax.f32 %v925, %v1181
        %v1310 = vmax.f32 %v926, %v1182
        %v1311 = vmax.f32 %v927, %v1183
        %v1312 = vmax.f32 %v928, %v1184
        %v1313 = vmax.f32 %v929, %v1185
        %v1314 = vmax.f32 %v930, %v1186
        %v1315 = vmax.f32 %v931, %v1187
        %v1316 = vmax.f32 %v932, %v1188
        %v1317 = vmax.f32 %v933, %v1189
        %v1318 = vmax.f32 %v934, %v1190
        %v1319 = vmax.f32 %v935, %v1191
        %v1320 = vmax.f32 %v936, %v1192
        %v1321 = vmax.f32 %v937, %v1193
        %v1322 = vmax.f32 %v938, %v1194
        %v1323 = vmax.f32 %v939, %v1195
        %v1324 = vmax.f32 %v940, %v1196
        %v1325 = vmax.f32 %v941, %v1197
        %v1326 = vmax.f32 %v942, %v1198
        %v1327 = vmax.f32 %v943, %v1199
        %v1328 = vmax.f32 %v944, %v1200
        %v1329 = vmax.f32 %v945, %v1201
        %v1330 = vmax.f32 %v946, %v1202
        %v1331 = vmax.f32 %v947, %v1203
        %v1332 = vmax.f32 %v948, %v1204
        %v1333 = vmax.f32 %v949, %v1205
        %v1334 = vmax.f32 %v950, %v1206
        %v1335 = vmax.f32 %v951, %v1207
        %v1336 = vmax.f32 %v952, %v1208
        %v1337 = vmax.f32 %v953, %v1209
        %v1338 = vmax.f32 %v954, %v1210
        %v1339 = vmax.f32 %v955, %v1211
        %v1340 = vmax.f32 %v956, %v1212
        %v1341 = vmax.f32 %v957, %v1213
        %v1342 = vmax.f32 %v958, %v1214
        %v1343 = vmax.f32 %v959, %v1215
        %v1344 = vmax.f32 %v960, %v1216
        %v1345 = vmax.f32 %v961, %v1217
        %v1346 = vmax.f32 %v962, %v1218
        %v1347 = vmax.f32 %v963, %v1219
        %v1348 = vmax.f32 %v964, %v1220
        %v1349 = vmax.f32 %v965, %v1221
        %v1350 = vmax.f32 %v966, %v1222
        %v1351 = vmax.f32 %v967, %v1223
        %v1352 = vmax.f32 %v968, %v1224
        %v1353 = vmax.f32 %v969, %v1225
        %v1354 = vmax.f32 %v970, %v1226
        %v1355 = vmax.f32 %v971, %v1227
        %v1356 = vmax.f32 %v972, %v1228
        %v1357 = vmax.f32 %v973, %v1229
        %v1358 = vmax.f32 %v974, %v1230
        %v1359 = vmax.f32 %v975, %v1231
        %v1360 = vmax.f32 %v976, %v1232
        %v1361 = vmax.f32 %v977, %v1233
        %v1362 = vmax.f32 %v978, %v1234
        %v1363 = vmax.f32 %v979, %v1235
        %v1364 = vmax.f32 %v980, %v1236
        %v1365 = vmax.f32 %v981, %v1237
        %v1366 = vmax.f32 %v982, %v1238
        %v1367 = vmax.f32 %v983, %v1239
        %v1368 = vmax.f32 %v984, %v1240
        %v1369 = vmax.f32 %v985, %v1241
        %v1370 = vmax.f32 %v986, %v1242
        %v1371 = vmax.f32 %v987, %v1243
        %v1372 = vmax.f32 %v988, %v1244
        %v1373 = vmax.f32 %v989, %v1245
        %v1374 = vmax.f32 %v990, %v1246
        %v1375 = vmax.f32 %v991, %v1247
        %v1376 = vmax.f32 %v992, %v1248
        %v1377 = vmax.f32 %v993, %v1249
        %v1378 = vmax.f32 %v994, %v1250
        %v1379 = vmax.f32 %v995, %v1251
        %v1380 = vmax.f32 %v996, %v1252
        %v1381 = vmax.f32 %v997, %v1253
        %v1382 = vmax.f32 %v998, %v1254
        %v1383 = vmax.f32 %v999, %v1255
        %v1384 = vmax.f32 %v1000, %v1256
        %v1385 = vmax.f32 %v1001, %v1257
        %v1386 = vmax.f32 %v1002, %v1258
        %v1387 = vmax.f32 %v1003, %v1259
        %v1388 = vmax.f32 %v1004, %v1260
        %v1389 = vmax.f32 %v1005, %v1261
        %v1390 = vmax.f32 %v1006, %v1262
        %v1391 = vmax.f32 %v1007, %v1263
        %v1392 = vmax.f32 %v1008, %v1264
        %v1393 = vmax.f32 %v1009, %v1265
        %v1394 = vmax.f32 %v1010, %v1266
        %v1395 = vmax.f32 %v1011, %v1267
        %v1396 = vmax.f32 %v1012, %v1268
        %v1397 = vmax.f32 %v1013, %v1269
        %v1398 = vmax.f32 %v1014, %v1270
        %v1399 = vmax.f32 %v1015, %v1271
        %v1400 = vmax.f32 %v1016, %v1272
        %v1401 = vmax.f32 %v1017, %v1273
        %v1402 = vmax.f32 %v1018, %v1274
        %v1403 = vmax.f32 %v1019, %v1275
        %v1404 = vmax.f32 %v1020, %v1276
        %v1405 = vmax.f32 %v1021, %v1277
        %v1406 = vmax.f32 %v1022, %v1278
        %v1407 = vmax.f32 %v1023, %v1279
        %v1408 = vmax.f32 %v1024, %v1280
        %v1409 = vmax.f32 %v1025, %v1281
        %v1410 = vmax.f32 %v1026, %v1282
        %v1411 = vmax.f32 %v1027, %v1283
        %v1412 = vmax.f32 %v1028, %v1284
        %v1413 = vmax.f32 %v1029, %v1285
        %v1414 = vmax.f32 %v1030, %v1286
        %v1415 = vmax.f32 %v1031, %v1287
        %v1416 = vmax.f32 %v1032, %v1288
        %v1417 = vmax.f32 %v1033, %v1289
        %v1418 = vmax.f32 %v1034, %v1290
        %v1419 = vmax.f32 %v1035, %v1291
        %v1420 = vmax.f32 %v1036, %v1292
        %v1421 = vpack.c.bf16 %v1297, %v1293
        %v1422 = vpack.c.bf16 %v1298, %v1294
        %v1423 = vpack.c.bf16 %v1299, %v1295
        %v1424 = vpack.c.bf16 %v1300, %v1296
        %v1425 = vpack.c.bf16 %v1305, %v1301
        %v1426 = vpack.c.bf16 %v1306, %v1302
        %v1427 = vpack.c.bf16 %v1307, %v1303
        %v1428 = vpack.c.bf16 %v1308, %v1304
        %v1429 = vpack.c.bf16 %v1313, %v1309
        %v1430 = vpack.c.bf16 %v1314, %v1310
        %v1431 = vpack.c.bf16 %v1315, %v1311
        %v1432 = vpack.c.bf16 %v1316, %v1312
        %v1433 = vpack.c.bf16 %v1321, %v1317
        %v1434 = vpack.c.bf16 %v1322, %v1318
        %v1435 = vpack.c.bf16 %v1323, %v1319
        %v1436 = vpack.c.bf16 %v1324, %v1320
        %v1437 = vpack.c.bf16 %v1329, %v1325
        %v1438 = vpack.c.bf16 %v1330, %v1326
        %v1439 = vpack.c.bf16 %v1331, %v1327
        %v1440 = vpack.c.bf16 %v1332, %v1328
        %v1441 = vpack.c.bf16 %v1337, %v1333
        %v1442 = vpack.c.bf16 %v1338, %v1334
        %v1443 = vpack.c.bf16 %v1339, %v1335
        %v1444 = vpack.c.bf16 %v1340, %v1336
        %v1445 = vpack.c.bf16 %v1345, %v1341
        %v1446 = vpack.c.bf16 %v1346, %v1342
        %v1447 = vpack.c.bf16 %v1347, %v1343
        %v1448 = vpack.c.bf16 %v1348, %v1344
        %v1449 = vpack.c.bf16 %v1353, %v1349
        %v1450 = vpack.c.bf16 %v1354, %v1350
        %v1451 = vpack.c.bf16 %v1355, %v1351
        %v1452 = vpack.c.bf16 %v1356, %v1352
        %v1453 = vpack.c.bf16 %v1361, %v1357
        %v1454 = vpack.c.bf16 %v1362, %v1358
        %v1455 = vpack.c.bf16 %v1363, %v1359
        %v1456 = vpack.c.bf16 %v1364, %v1360
        %v1457 = vpack.c.bf16 %v1369, %v1365
        %v1458 = vpack.c.bf16 %v1370, %v1366
        %v1459 = vpack.c.bf16 %v1371, %v1367
        %v1460 = vpack.c.bf16 %v1372, %v1368
        %v1461 = vpack.c.bf16 %v1377, %v1373
        %v1462 = vpack.c.bf16 %v1378, %v1374
        %v1463 = vpack.c.bf16 %v1379, %v1375
        %v1464 = vpack.c.bf16 %v1380, %v1376
        %v1465 = vpack.c.bf16 %v1385, %v1381
        %v1466 = vpack.c.bf16 %v1386, %v1382
        %v1467 = vpack.c.bf16 %v1387, %v1383
        %v1468 = vpack.c.bf16 %v1388, %v1384
        %v1469 = vpack.c.bf16 %v1393, %v1389
        %v1470 = vpack.c.bf16 %v1394, %v1390
        %v1471 = vpack.c.bf16 %v1395, %v1391
        %v1472 = vpack.c.bf16 %v1396, %v1392
        %v1473 = vpack.c.bf16 %v1401, %v1397
        %v1474 = vpack.c.bf16 %v1402, %v1398
        %v1475 = vpack.c.bf16 %v1403, %v1399
        %v1476 = vpack.c.bf16 %v1404, %v1400
        %v1477 = vpack.c.bf16 %v1409, %v1405
        %v1478 = vpack.c.bf16 %v1410, %v1406
        %v1479 = vpack.c.bf16 %v1411, %v1407
        %v1480 = vpack.c.bf16 %v1412, %v1408
        %v1481 = vpack.c.bf16 %v1417, %v1413
        %v1482 = vpack.c.bf16 %v1418, %v1414
        %v1483 = vpack.c.bf16 %v1419, %v1415
        %v1484 = vpack.c.bf16 %v1420, %v1416
        %v1485 = vld [vmem:[%s3] sm:$0xff]
        %v1486 = vld [vmem:[%s3 + $0x8] sm:$0xff]
        %v1487 = vld [vmem:[%s3 + $0x10] sm:$0xff]
        %v1488 = vld [vmem:[%s3 + $0x18] sm:$0xff]
        %v1489 = vld [vmem:[%s3 + $0x20] sm:$0xff]
        %v1490 = vld [vmem:[%s3 + $0x28] sm:$0xff]
        %v1491 = vld [vmem:[%s3 + $0x30] sm:$0xff]
        %v1492 = vld [vmem:[%s3 + $0x38] sm:$0xff]
        %v1493 = vld [vmem:[%s3 + $0x40] sm:$0xff]
        %v1494 = vld [vmem:[%s3 + $0x48] sm:$0xff]
        %v1495 = vld [vmem:[%s3 + $0x50] sm:$0xff]
        %v1496 = vld [vmem:[%s3 + $0x58] sm:$0xff]
        %v1497 = vld [vmem:[%s3 + $0x60] sm:$0xff]
        %v1498 = vld [vmem:[%s3 + $0x68] sm:$0xff]
        %v1499 = vld [vmem:[%s3 + $0x70] sm:$0xff]
        %v1500 = vld [vmem:[%s3 + $0x78] sm:$0xff]
        %v1501 = vld [vmem:[%s3 + $0x80] sm:$0xff]
        %v1502 = vld [vmem:[%s3 + $0x88] sm:$0xff]
        %v1503 = vld [vmem:[%s3 + $0x90] sm:$0xff]
        %v1504 = vld [vmem:[%s3 + $0x98] sm:$0xff]
        %v1505 = vld [vmem:[%s3 + $0xa0] sm:$0xff]
        %v1506 = vld [vmem:[%s3 + $0xa8] sm:$0xff]
        %v1507 = vld [vmem:[%s3 + $0xb0] sm:$0xff]
        %v1508 = vld [vmem:[%s3 + $0xb8] sm:$0xff]
        %v1509 = vld [vmem:[%s3 + $0xc0] sm:$0xff]
        %v1510 = vld [vmem:[%s3 + $0xc8] sm:$0xff]
        %v1511 = vld [vmem:[%s3 + $0xd0] sm:$0xff]
        %v1512 = vld [vmem:[%s3 + $0xd8] sm:$0xff]
        %v1513 = vld [vmem:[%s3 + $0xe0] sm:$0xff]
        %v1514 = vld [vmem:[%s3 + $0xe8] sm:$0xff]
        %v1515 = vld [vmem:[%s3 + $0xf0] sm:$0xff]
        %v1516 = vld [vmem:[%s3 + $0xf8] sm:$0xff]
        %v1517 = vld [vmem:[%s3 + $0x100] sm:$0xff]
        %v1518 = vld [vmem:[%s3 + $0x108] sm:$0xff]
        %v1519 = vld [vmem:[%s3 + $0x110] sm:$0xff]
        %v1520 = vld [vmem:[%s3 + $0x118] sm:$0xff]
        %v1521 = vld [vmem:[%s3 + $0x120] sm:$0xff]
        %v1522 = vld [vmem:[%s3 + $0x128] sm:$0xff]
        %v1523 = vld [vmem:[%s3 + $0x130] sm:$0xff]
        %v1524 = vld [vmem:[%s3 + $0x138] sm:$0xff]
        %v1525 = vld [vmem:[%s3 + $0x140] sm:$0xff]
        %v1526 = vld [vmem:[%s3 + $0x148] sm:$0xff]
        %v1527 = vld [vmem:[%s3 + $0x150] sm:$0xff]
        %v1528 = vld [vmem:[%s3 + $0x158] sm:$0xff]
        %v1529 = vld [vmem:[%s3 + $0x160] sm:$0xff]
        %v1530 = vld [vmem:[%s3 + $0x168] sm:$0xff]
        %v1531 = vld [vmem:[%s3 + $0x170] sm:$0xff]
        %v1532 = vld [vmem:[%s3 + $0x178] sm:$0xff]
        %v1533 = vld [vmem:[%s3 + $0x180] sm:$0xff]
        %v1534 = vld [vmem:[%s3 + $0x188] sm:$0xff]
        %v1535 = vld [vmem:[%s3 + $0x190] sm:$0xff]
        %v1536 = vld [vmem:[%s3 + $0x198] sm:$0xff]
        %v1537 = vld [vmem:[%s3 + $0x1a0] sm:$0xff]
        %v1538 = vld [vmem:[%s3 + $0x1a8] sm:$0xff]
        %v1539 = vld [vmem:[%s3 + $0x1b0] sm:$0xff]
        %v1540 = vld [vmem:[%s3 + $0x1b8] sm:$0xff]
        %v1541 = vld [vmem:[%s3 + $0x1c0] sm:$0xff]
        %v1542 = vld [vmem:[%s3 + $0x1c8] sm:$0xff]
        %v1543 = vld [vmem:[%s3 + $0x1d0] sm:$0xff]
        %v1544 = vld [vmem:[%s3 + $0x1d8] sm:$0xff]
        %v1545 = vld [vmem:[%s3 + $0x1e0] sm:$0xff]
        %v1546 = vld [vmem:[%s3 + $0x1e8] sm:$0xff]
        %v1547 = vld [vmem:[%s3 + $0x1f0] sm:$0xff]
        %v1548 = vld [vmem:[%s3 + $0x1f8] sm:$0xff]
        %v1549 = vld [vmem:[%s4] sm:$0x3]
        %v1551 = vlaneseq
        %v1552 = vshrl.u32 %v1551, 7
        %v1553 = vsub.s32 0, %v1552
        %v1554 = vrot.slane %v1549, %v1553
        %v1555 = vlaneseq
        %v1556 = vshrl.u32 %v1555, 7
        %v1557 = vsub.s32 1, %v1556
        %v1558 = vrot.slane %v1549, %v1557
        %v1625 = vunpack.c.l.b16 %v1485
        %v1626 = vunpack.c.h.b16 %v1485
        %v1627 = vunpack.c.l.b16 %v1486
        %v1628 = vunpack.c.h.b16 %v1486
        %v1629 = vunpack.c.l.b16 %v1487
        %v1630 = vunpack.c.h.b16 %v1487
        %v1631 = vunpack.c.l.b16 %v1488
        %v1632 = vunpack.c.h.b16 %v1488
        %v1633 = vunpack.c.l.b16 %v1489
        %v1634 = vunpack.c.h.b16 %v1489
        %v1635 = vunpack.c.l.b16 %v1490
        %v1636 = vunpack.c.h.b16 %v1490
        %v1637 = vunpack.c.l.b16 %v1491
        %v1638 = vunpack.c.h.b16 %v1491
        %v1639 = vunpack.c.l.b16 %v1492
        %v1640 = vunpack.c.h.b16 %v1492
        %v1641 = vunpack.c.l.b16 %v1493
        %v1642 = vunpack.c.h.b16 %v1493
        %v1643 = vunpack.c.l.b16 %v1494
        %v1644 = vunpack.c.h.b16 %v1494
        %v1645 = vunpack.c.l.b16 %v1495
        %v1646 = vunpack.c.h.b16 %v1495
        %v1647 = vunpack.c.l.b16 %v1496
        %v1648 = vunpack.c.h.b16 %v1496
        %v1649 = vunpack.c.l.b16 %v1497
        %v1650 = vunpack.c.h.b16 %v1497
        %v1651 = vunpack.c.l.b16 %v1498
        %v1652 = vunpack.c.h.b16 %v1498
        %v1653 = vunpack.c.l.b16 %v1499
        %v1654 = vunpack.c.h.b16 %v1499
        %v1655 = vunpack.c.l.b16 %v1500
        %v1656 = vunpack.c.h.b16 %v1500
        %v1657 = vunpack.c.l.b16 %v1501
        %v1658 = vunpack.c.h.b16 %v1501
        %v1659 = vunpack.c.l.b16 %v1502
        %v1660 = vunpack.c.h.b16 %v1502
        %v1661 = vunpack.c.l.b16 %v1503
        %v1662 = vunpack.c.h.b16 %v1503
        %v1663 = vunpack.c.l.b16 %v1504
        %v1664 = vunpack.c.h.b16 %v1504
        %v1665 = vunpack.c.l.b16 %v1505
        %v1666 = vunpack.c.h.b16 %v1505
        %v1667 = vunpack.c.l.b16 %v1506
        %v1668 = vunpack.c.h.b16 %v1506
        %v1669 = vunpack.c.l.b16 %v1507
        %v1670 = vunpack.c.h.b16 %v1507
        %v1671 = vunpack.c.l.b16 %v1508
        %v1672 = vunpack.c.h.b16 %v1508
        %v1673 = vunpack.c.l.b16 %v1509
        %v1674 = vunpack.c.h.b16 %v1509
        %v1675 = vunpack.c.l.b16 %v1510
        %v1676 = vunpack.c.h.b16 %v1510
        %v1677 = vunpack.c.l.b16 %v1511
        %v1678 = vunpack.c.h.b16 %v1511
        %v1679 = vunpack.c.l.b16 %v1512
        %v1680 = vunpack.c.h.b16 %v1512
        %v1681 = vunpack.c.l.b16 %v1513
        %v1682 = vunpack.c.h.b16 %v1513
        %v1683 = vunpack.c.l.b16 %v1514
        %v1684 = vunpack.c.h.b16 %v1514
        %v1685 = vunpack.c.l.b16 %v1515
        %v1686 = vunpack.c.h.b16 %v1515
        %v1687 = vunpack.c.l.b16 %v1516
        %v1688 = vunpack.c.h.b16 %v1516
        %v1689 = vunpack.c.l.b16 %v1517
        %v1690 = vunpack.c.h.b16 %v1517
        %v1691 = vunpack.c.l.b16 %v1518
        %v1692 = vunpack.c.h.b16 %v1518
        %v1693 = vunpack.c.l.b16 %v1519
        %v1694 = vunpack.c.h.b16 %v1519
        %v1695 = vunpack.c.l.b16 %v1520
        %v1696 = vunpack.c.h.b16 %v1520
        %v1697 = vunpack.c.l.b16 %v1521
        %v1698 = vunpack.c.h.b16 %v1521
        %v1699 = vunpack.c.l.b16 %v1522
        %v1700 = vunpack.c.h.b16 %v1522
        %v1701 = vunpack.c.l.b16 %v1523
        %v1702 = vunpack.c.h.b16 %v1523
        %v1703 = vunpack.c.l.b16 %v1524
        %v1704 = vunpack.c.h.b16 %v1524
        %v1705 = vunpack.c.l.b16 %v1525
        %v1706 = vunpack.c.h.b16 %v1525
        %v1707 = vunpack.c.l.b16 %v1526
        %v1708 = vunpack.c.h.b16 %v1526
        %v1709 = vunpack.c.l.b16 %v1527
        %v1710 = vunpack.c.h.b16 %v1527
        %v1711 = vunpack.c.l.b16 %v1528
        %v1712 = vunpack.c.h.b16 %v1528
        %v1713 = vunpack.c.l.b16 %v1529
        %v1714 = vunpack.c.h.b16 %v1529
        %v1715 = vunpack.c.l.b16 %v1530
        %v1716 = vunpack.c.h.b16 %v1530
        %v1717 = vunpack.c.l.b16 %v1531
        %v1718 = vunpack.c.h.b16 %v1531
        %v1719 = vunpack.c.l.b16 %v1532
        %v1720 = vunpack.c.h.b16 %v1532
        %v1721 = vunpack.c.l.b16 %v1533
        %v1722 = vunpack.c.h.b16 %v1533
        %v1723 = vunpack.c.l.b16 %v1534
        %v1724 = vunpack.c.h.b16 %v1534
        %v1725 = vunpack.c.l.b16 %v1535
        %v1726 = vunpack.c.h.b16 %v1535
        %v1727 = vunpack.c.l.b16 %v1536
        %v1728 = vunpack.c.h.b16 %v1536
        %v1729 = vunpack.c.l.b16 %v1537
        %v1730 = vunpack.c.h.b16 %v1537
        %v1731 = vunpack.c.l.b16 %v1538
        %v1732 = vunpack.c.h.b16 %v1538
        %v1733 = vunpack.c.l.b16 %v1539
        %v1734 = vunpack.c.h.b16 %v1539
        %v1735 = vunpack.c.l.b16 %v1540
        %v1736 = vunpack.c.h.b16 %v1540
        %v1737 = vunpack.c.l.b16 %v1541
        %v1738 = vunpack.c.h.b16 %v1541
        %v1739 = vunpack.c.l.b16 %v1542
        %v1740 = vunpack.c.h.b16 %v1542
        %v1741 = vunpack.c.l.b16 %v1543
        %v1742 = vunpack.c.h.b16 %v1543
        %v1743 = vunpack.c.l.b16 %v1544
        %v1744 = vunpack.c.h.b16 %v1544
        %v1745 = vunpack.c.l.b16 %v1545
        %v1746 = vunpack.c.h.b16 %v1545
        %v1747 = vunpack.c.l.b16 %v1546
        %v1748 = vunpack.c.h.b16 %v1546
        %v1749 = vunpack.c.l.b16 %v1547
        %v1750 = vunpack.c.h.b16 %v1547
        %v1751 = vunpack.c.l.b16 %v1548
        %v1752 = vunpack.c.h.b16 %v1548
        %v1753 = vpack.c.b16 %v1627, %v1625
        %v1754 = vpack.c.b16 %v1628, %v1626
        %v1755 = vpack.c.b16 %v1631, %v1629
        %v1756 = vpack.c.b16 %v1632, %v1630
        %v1757 = vpack.c.b16 %v1635, %v1633
        %v1758 = vpack.c.b16 %v1636, %v1634
        %v1759 = vpack.c.b16 %v1639, %v1637
        %v1760 = vpack.c.b16 %v1640, %v1638
        %v1761 = vpack.c.b16 %v1643, %v1641
        %v1762 = vpack.c.b16 %v1644, %v1642
        %v1763 = vpack.c.b16 %v1647, %v1645
        %v1764 = vpack.c.b16 %v1648, %v1646
        %v1765 = vpack.c.b16 %v1651, %v1649
        %v1766 = vpack.c.b16 %v1652, %v1650
        %v1767 = vpack.c.b16 %v1655, %v1653
        %v1768 = vpack.c.b16 %v1656, %v1654
        %v1769 = vpack.c.b16 %v1659, %v1657
        %v1770 = vpack.c.b16 %v1660, %v1658
        %v1771 = vpack.c.b16 %v1663, %v1661
        %v1772 = vpack.c.b16 %v1664, %v1662
        %v1773 = vpack.c.b16 %v1667, %v1665
        %v1774 = vpack.c.b16 %v1668, %v1666
        %v1775 = vpack.c.b16 %v1671, %v1669
        %v1776 = vpack.c.b16 %v1672, %v1670
        %v1777 = vpack.c.b16 %v1675, %v1673
        %v1778 = vpack.c.b16 %v1676, %v1674
        %v1779 = vpack.c.b16 %v1679, %v1677
        %v1780 = vpack.c.b16 %v1680, %v1678
        %v1781 = vpack.c.b16 %v1683, %v1681
        %v1782 = vpack.c.b16 %v1684, %v1682
        %v1783 = vpack.c.b16 %v1687, %v1685
        %v1784 = vpack.c.b16 %v1688, %v1686
        %v1785 = vpack.c.b16 %v1691, %v1689
        %v1786 = vpack.c.b16 %v1692, %v1690
        %v1787 = vpack.c.b16 %v1695, %v1693
        %v1788 = vpack.c.b16 %v1696, %v1694
        %v1789 = vpack.c.b16 %v1699, %v1697
        %v1790 = vpack.c.b16 %v1700, %v1698
        %v1791 = vpack.c.b16 %v1703, %v1701
        %v1792 = vpack.c.b16 %v1704, %v1702
        %v1793 = vpack.c.b16 %v1707, %v1705
        %v1794 = vpack.c.b16 %v1708, %v1706
        %v1795 = vpack.c.b16 %v1711, %v1709
        %v1796 = vpack.c.b16 %v1712, %v1710
        %v1797 = vpack.c.b16 %v1715, %v1713
        %v1798 = vpack.c.b16 %v1716, %v1714
        %v1799 = vpack.c.b16 %v1719, %v1717
        %v1800 = vpack.c.b16 %v1720, %v1718
        %v1801 = vpack.c.b16 %v1723, %v1721
        %v1802 = vpack.c.b16 %v1724, %v1722
        %v1803 = vpack.c.b16 %v1727, %v1725
        %v1804 = vpack.c.b16 %v1728, %v1726
        %v1805 = vpack.c.b16 %v1731, %v1729
        %v1806 = vpack.c.b16 %v1732, %v1730
        %v1807 = vpack.c.b16 %v1735, %v1733
        %v1808 = vpack.c.b16 %v1736, %v1734
        %v1809 = vpack.c.b16 %v1739, %v1737
        %v1810 = vpack.c.b16 %v1740, %v1738
        %v1811 = vpack.c.b16 %v1743, %v1741
        %v1812 = vpack.c.b16 %v1744, %v1742
        %v1813 = vpack.c.b16 %v1747, %v1745
        %v1814 = vpack.c.b16 %v1748, %v1746
        %v1815 = vpack.c.b16 %v1751, %v1749
        %v1816 = vpack.c.b16 %v1752, %v1750
        %1881 = vmatprep.subr.bf16.mxu0 %v1754
        %1882 = vmatpush1.bf16.msra.mxu0 %v1753
        %1883 = vmatprep.subr.bf16.mxu0 %v1756
        %1884 = vmatpush1.bf16.msra.mxu0 %v1755
        %1885 = vmatprep.subr.bf16.mxu0 %v1758
        %1886 = vmatpush1.bf16.msra.mxu0 %v1757
        %1887 = vmatprep.subr.bf16.mxu0 %v1760
        %1888 = vmatpush1.bf16.msra.mxu0 %v1759
        %1889 = vmatprep.subr.bf16.mxu0 %v1762
        %1890 = vmatpush1.bf16.msra.mxu0 %v1761
        %1891 = vmatprep.subr.bf16.mxu0 %v1764
        %1892 = vmatpush1.bf16.msra.mxu0 %v1763
        %1893 = vmatprep.subr.bf16.mxu0 %v1766
        %1894 = vmatpush1.bf16.msra.mxu0 %v1765
        %1895 = vmatprep.subr.bf16.mxu0 %v1768
        %1896 = vmatpush1.bf16.msra.mxu0 %v1767
        %1897 = vmatprep.subr.bf16.mxu0 %v1770
        %1898 = vmatpush1.bf16.msra.mxu0 %v1769
        %1899 = vmatprep.subr.bf16.mxu0 %v1772
        %1900 = vmatpush1.bf16.msra.mxu0 %v1771
        %1901 = vmatprep.subr.bf16.mxu0 %v1774
        %1902 = vmatpush1.bf16.msra.mxu0 %v1773
        %1903 = vmatprep.subr.bf16.mxu0 %v1776
        %1904 = vmatpush1.bf16.msra.mxu0 %v1775
        %1905 = vmatprep.subr.bf16.mxu0 %v1778
        %1906 = vmatpush1.bf16.msra.mxu0 %v1777
        %1907 = vmatprep.subr.bf16.mxu0 %v1780
        %1908 = vmatpush1.bf16.msra.mxu0 %v1779
        %1909 = vmatprep.subr.bf16.mxu0 %v1782
        %1910 = vmatpush1.bf16.msra.mxu0 %v1781
        %1911 = vmatprep.subr.bf16.mxu0 %v1784
        %1912 = vmatpush1.bf16.msra.mxu0 %v1783
        %1913 = vmatprep.mubr.bf16.mxu0 %v1422
        %1914 = vmatmul.mubr.bf16.gmra.mrb[0].mxu0 %v1421
        %v1915 = vpop.f32.mrb[0].mxu0
        %v1916 = vadd.f32 %v1554, %v1915
        %v1917 = vpop.f32.mrb[0].mxu0
        %v1918 = vadd.f32 %v1558, %v1917
        %v1919 = vpop.f32.mrb[0].mxu0
        %v1920 = vadd.f32 %v1554, %v1919
        %v1921 = vpop.f32.mrb[0].mxu0
        %v1922 = vadd.f32 %v1558, %v1921
        %1923 = vmatprep.mubr.bf16.mxu0 %v1426
        %1924 = vmatmul.mubr.bf16.gmra.mrb[0].mxu0 %v1425
        %v1925 = vpop.f32.mrb[0].mxu0
        %v1926 = vadd.f32 %v1554, %v1925
        %v1927 = vpop.f32.mrb[0].mxu0
        %v1928 = vadd.f32 %v1558, %v1927
        %v1929 = vpop.f32.mrb[0].mxu0
        %v1930 = vadd.f32 %v1554, %v1929
        %v1931 = vpop.f32.mrb[0].mxu0
        %v1932 = vadd.f32 %v1558, %v1931
        %1933 = vmatprep.mubr.bf16.mxu0 %v1430
        %1934 = vmatmul.mubr.bf16.gmra.mrb[0].mxu0 %v1429
        %v1935 = vpop.f32.mrb[0].mxu0
        %v1936 = vadd.f32 %v1554, %v1935
        %v1937 = vpop.f32.mrb[0].mxu0
        %v1938 = vadd.f32 %v1558, %v1937
        %v1939 = vpop.f32.mrb[0].mxu0
        %v1940 = vadd.f32 %v1554, %v1939
        %v1941 = vpop.f32.mrb[0].mxu0
        %v1942 = vadd.f32 %v1558, %v1941
        %1943 = vmatprep.mubr.bf16.mxu0 %v1434
        %1944 = vmatmul.mubr.bf16.gmra.mrb[0].mxu0 %v1433
        %v1945 = vpop.f32.mrb[0].mxu0
        %v1946 = vadd.f32 %v1554, %v1945
        %v1947 = vpop.f32.mrb[0].mxu0
        %v1948 = vadd.f32 %v1558, %v1947
        %v1949 = vpop.f32.mrb[0].mxu0
        %v1950 = vadd.f32 %v1554, %v1949
        %v1951 = vpop.f32.mrb[0].mxu0
        %v1952 = vadd.f32 %v1558, %v1951
        %1953 = vmatprep.mubr.bf16.mxu0 %v1438
        %1954 = vmatmul.mubr.bf16.gmra.mrb[0].mxu0 %v1437
        %v1955 = vpop.f32.mrb[0].mxu0
        %v1956 = vadd.f32 %v1554, %v1955
        %v1957 = vpop.f32.mrb[0].mxu0
        %v1958 = vadd.f32 %v1558, %v1957
        %v1959 = vpop.f32.mrb[0].mxu0
        %v1960 = vadd.f32 %v1554, %v1959
        %v1961 = vpop.f32.mrb[0].mxu0
        %v1962 = vadd.f32 %v1558, %v1961
        %1963 = vmatprep.mubr.bf16.mxu0 %v1442
        %1964 = vmatmul.mubr.bf16.gmra.mrb[0].mxu0 %v1441
        %v1965 = vpop.f32.mrb[0].mxu0
        %v1966 = vadd.f32 %v1554, %v1965
        %v1967 = vpop.f32.mrb[0].mxu0
        %v1968 = vadd.f32 %v1558, %v1967
        %v1969 = vpop.f32.mrb[0].mxu0
        %v1970 = vadd.f32 %v1554, %v1969
        %v1971 = vpop.f32.mrb[0].mxu0
        %v1972 = vadd.f32 %v1558, %v1971
        %1973 = vmatprep.mubr.bf16.mxu0 %v1446
        %1974 = vmatmul.mubr.bf16.gmra.mrb[0].mxu0 %v1445
        %v1975 = vpop.f32.mrb[0].mxu0
        %v1976 = vadd.f32 %v1554, %v1975
        %v1977 = vpop.f32.mrb[0].mxu0
        %v1978 = vadd.f32 %v1558, %v1977
        %v1979 = vpop.f32.mrb[0].mxu0
        %v1980 = vadd.f32 %v1554, %v1979
        %v1981 = vpop.f32.mrb[0].mxu0
        %v1982 = vadd.f32 %v1558, %v1981
        %1983 = vmatprep.mubr.bf16.mxu0 %v1450
        %1984 = vmatmul.mubr.bf16.gmra.mrb[0].mxu0 %v1449
        %v1985 = vpop.f32.mrb[0].mxu0
        %v1986 = vadd.f32 %v1554, %v1985
        %v1987 = vpop.f32.mrb[0].mxu0
        %v1988 = vadd.f32 %v1558, %v1987
        %v1989 = vpop.f32.mrb[0].mxu0
        %v1990 = vadd.f32 %v1554, %v1989
        %v1991 = vpop.f32.mrb[0].mxu0
        %v1992 = vadd.f32 %v1558, %v1991
        %1993 = vmatprep.mubr.bf16.mxu0 %v1454
        %1994 = vmatmul.mubr.bf16.gmra.mrb[0].mxu0 %v1453
        %v1995 = vpop.f32.mrb[0].mxu0
        %v1996 = vadd.f32 %v1554, %v1995
        %v1997 = vpop.f32.mrb[0].mxu0
        %v1998 = vadd.f32 %v1558, %v1997
        %v1999 = vpop.f32.mrb[0].mxu0
        %v2000 = vadd.f32 %v1554, %v1999
        %v2001 = vpop.f32.mrb[0].mxu0
        %v2002 = vadd.f32 %v1558, %v2001
        %2003 = vmatprep.mubr.bf16.mxu0 %v1458
        %2004 = vmatmul.mubr.bf16.gmra.mrb[0].mxu0 %v1457
        %v2005 = vpop.f32.mrb[0].mxu0
        %v2006 = vadd.f32 %v1554, %v2005
        %v2007 = vpop.f32.mrb[0].mxu0
        %v2008 = vadd.f32 %v1558, %v2007
        %v2009 = vpop.f32.mrb[0].mxu0
        %v2010 = vadd.f32 %v1554, %v2009
        %v2011 = vpop.f32.mrb[0].mxu0
        %v2012 = vadd.f32 %v1558, %v2011
        %2013 = vmatprep.mubr.bf16.mxu0 %v1462
        %2014 = vmatmul.mubr.bf16.gmra.mrb[0].mxu0 %v1461
        %v2015 = vpop.f32.mrb[0].mxu0
        %v2016 = vadd.f32 %v1554, %v2015
        %v2017 = vpop.f32.mrb[0].mxu0
        %v2018 = vadd.f32 %v1558, %v2017
        %v2019 = vpop.f32.mrb[0].mxu0
        %v2020 = vadd.f32 %v1554, %v2019
        %v2021 = vpop.f32.mrb[0].mxu0
        %v2022 = vadd.f32 %v1558, %v2021
        %2023 = vmatprep.mubr.bf16.mxu0 %v1466
        %2024 = vmatmul.mubr.bf16.gmra.mrb[0].mxu0 %v1465
        %v2025 = vpop.f32.mrb[0].mxu0
        %v2026 = vadd.f32 %v1554, %v2025
        %v2027 = vpop.f32.mrb[0].mxu0
        %v2028 = vadd.f32 %v1558, %v2027
        %v2029 = vpop.f32.mrb[0].mxu0
        %v2030 = vadd.f32 %v1554, %v2029
        %v2031 = vpop.f32.mrb[0].mxu0
        %v2032 = vadd.f32 %v1558, %v2031
        %2033 = vmatprep.mubr.bf16.mxu0 %v1470
        %2034 = vmatmul.mubr.bf16.gmra.mrb[0].mxu0 %v1469
        %v2035 = vpop.f32.mrb[0].mxu0
        %v2036 = vadd.f32 %v1554, %v2035
        %v2037 = vpop.f32.mrb[0].mxu0
        %v2038 = vadd.f32 %v1558, %v2037
        %v2039 = vpop.f32.mrb[0].mxu0
        %v2040 = vadd.f32 %v1554, %v2039
        %v2041 = vpop.f32.mrb[0].mxu0
        %v2042 = vadd.f32 %v1558, %v2041
        %2043 = vmatprep.mubr.bf16.mxu0 %v1474
        %2044 = vmatmul.mubr.bf16.gmra.mrb[0].mxu0 %v1473
        %v2045 = vpop.f32.mrb[0].mxu0
        %v2046 = vadd.f32 %v1554, %v2045
        %v2047 = vpop.f32.mrb[0].mxu0
        %v2048 = vadd.f32 %v1558, %v2047
        %v2049 = vpop.f32.mrb[0].mxu0
        %v2050 = vadd.f32 %v1554, %v2049
        %v2051 = vpop.f32.mrb[0].mxu0
        %v2052 = vadd.f32 %v1558, %v2051
        %2053 = vmatprep.mubr.bf16.mxu0 %v1478
        %2054 = vmatmul.mubr.bf16.gmra.mrb[0].mxu0 %v1477
        %v2055 = vpop.f32.mrb[0].mxu0
        %v2056 = vadd.f32 %v1554, %v2055
        %v2057 = vpop.f32.mrb[0].mxu0
        %v2058 = vadd.f32 %v1558, %v2057
        %v2059 = vpop.f32.mrb[0].mxu0
        %v2060 = vadd.f32 %v1554, %v2059
        %v2061 = vpop.f32.mrb[0].mxu0
        %v2062 = vadd.f32 %v1558, %v2061
        %2063 = vmatprep.mubr.bf16.mxu0 %v1482
        %2064 = vmatmul.mubr.bf16.gmra.mrb[0].mxu0 %v1481
        %v2065 = vpop.f32.mrb[0].mxu0
        %v2066 = vadd.f32 %v1554, %v2065
        %v2067 = vpop.f32.mrb[0].mxu0
        %v2068 = vadd.f32 %v1558, %v2067
        %v2069 = vpop.f32.mrb[0].mxu0
        %v2070 = vadd.f32 %v1554, %v2069
        %v2071 = vpop.f32.mrb[0].mxu0
        %v2072 = vadd.f32 %v1558, %v2071
        %2073 = vdwg.mxu0
        %2074 = vmatprep.subr.bf16.mxu0 %v1786
        %2075 = vmatpush1.bf16.msra.mxu0 %v1785
        %2076 = vmatprep.subr.bf16.mxu0 %v1788
        %2077 = vmatpush1.bf16.msra.mxu0 %v1787
        %2078 = vmatprep.subr.bf16.mxu0 %v1790
        %2079 = vmatpush1.bf16.msra.mxu0 %v1789
        %2080 = vmatprep.subr.bf16.mxu0 %v1792
        %2081 = vmatpush1.bf16.msra.mxu0 %v1791
        %2082 = vmatprep.subr.bf16.mxu0 %v1794
        %2083 = vmatpush1.bf16.msra.mxu0 %v1793
        %2084 = vmatprep.subr.bf16.mxu0 %v1796
        %2085 = vmatpush1.bf16.msra.mxu0 %v1795
        %2086 = vmatprep.subr.bf16.mxu0 %v1798
        %2087 = vmatpush1.bf16.msra.mxu0 %v1797
        %2088 = vmatprep.subr.bf16.mxu0 %v1800
        %2089 = vmatpush1.bf16.msra.mxu0 %v1799
        %2090 = vmatprep.subr.bf16.mxu0 %v1802
        %2091 = vmatpush1.bf16.msra.mxu0 %v1801
        %2092 = vmatprep.subr.bf16.mxu0 %v1804
        %2093 = vmatpush1.bf16.msra.mxu0 %v1803
        %2094 = vmatprep.subr.bf16.mxu0 %v1806
        %2095 = vmatpush1.bf16.msra.mxu0 %v1805
        %2096 = vmatprep.subr.bf16.mxu0 %v1808
        %2097 = vmatpush1.bf16.msra.mxu0 %v1807
        %2098 = vmatprep.subr.bf16.mxu0 %v1810
        %2099 = vmatpush1.bf16.msra.mxu0 %v1809
        %2100 = vmatprep.subr.bf16.mxu0 %v1812
        %2101 = vmatpush1.bf16.msra.mxu0 %v1811
        %2102 = vmatprep.subr.bf16.mxu0 %v1814
        %2103 = vmatpush1.bf16.msra.mxu0 %v1813
        %2104 = vmatprep.subr.bf16.mxu0 %v1816
        %2105 = vmatpush1.bf16.msra.mxu0 %v1815
        %2106 = vmatprep.mubr.bf16.mxu0 %v1424
        %2107 = vmatmul.mubr.bf16.gmra.mrb[0].mxu0 %v1423
        %v2108 = vpop.f32.mrb[0].mxu0
        %v2109 = vadd.f32 %v1916, %v2108
        %v2110 = vpop.f32.mrb[0].mxu0
        %v2111 = vadd.f32 %v1918, %v2110
        %v2112 = vpop.f32.mrb[0].mxu0
        %v2113 = vadd.f32 %v1920, %v2112
        %v2114 = vpop.f32.mrb[0].mxu0
        %v2115 = vadd.f32 %v1922, %v2114
        %2116 = vmatprep.mubr.bf16.mxu0 %v1428
        %2117 = vmatmul.mubr.bf16.gmra.mrb[0].mxu0 %v1427
        %v2118 = vpop.f32.mrb[0].mxu0
        %v2119 = vadd.f32 %v1926, %v2118
        %v2120 = vpop.f32.mrb[0].mxu0
        %v2121 = vadd.f32 %v1928, %v2120
        %v2122 = vpop.f32.mrb[0].mxu0
        %v2123 = vadd.f32 %v1930, %v2122
        %v2124 = vpop.f32.mrb[0].mxu0
        %v2125 = vadd.f32 %v1932, %v2124
        %2126 = vmatprep.mubr.bf16.mxu0 %v1432
        %2127 = vmatmul.mubr.bf16.gmra.mrb[0].mxu0 %v1431
        %v2128 = vpop.f32.mrb[0].mxu0
        %v2129 = vadd.f32 %v1936, %v2128
        %v2130 = vpop.f32.mrb[0].mxu0
        %v2131 = vadd.f32 %v1938, %v2130
        %v2132 = vpop.f32.mrb[0].mxu0
        %v2133 = vadd.f32 %v1940, %v2132
        %v2134 = vpop.f32.mrb[0].mxu0
        %v2135 = vadd.f32 %v1942, %v2134
        %2136 = vmatprep.mubr.bf16.mxu0 %v1436
        %2137 = vmatmul.mubr.bf16.gmra.mrb[0].mxu0 %v1435
        %v2138 = vpop.f32.mrb[0].mxu0
        %v2139 = vadd.f32 %v1946, %v2138
        %v2140 = vpop.f32.mrb[0].mxu0
        %v2141 = vadd.f32 %v1948, %v2140
        %v2142 = vpop.f32.mrb[0].mxu0
        %v2143 = vadd.f32 %v1950, %v2142
        %v2144 = vpop.f32.mrb[0].mxu0
        %v2145 = vadd.f32 %v1952, %v2144
        %2146 = vmatprep.mubr.bf16.mxu0 %v1440
        %2147 = vmatmul.mubr.bf16.gmra.mrb[0].mxu0 %v1439
        %v2148 = vpop.f32.mrb[0].mxu0
        %v2149 = vadd.f32 %v1956, %v2148
        %v2150 = vpop.f32.mrb[0].mxu0
        %v2151 = vadd.f32 %v1958, %v2150
        %v2152 = vpop.f32.mrb[0].mxu0
        %v2153 = vadd.f32 %v1960, %v2152
        %v2154 = vpop.f32.mrb[0].mxu0
        %v2155 = vadd.f32 %v1962, %v2154
        %2156 = vmatprep.mubr.bf16.mxu0 %v1444
        %2157 = vmatmul.mubr.bf16.gmra.mrb[0].mxu0 %v1443
        %v2158 = vpop.f32.mrb[0].mxu0
        %v2159 = vadd.f32 %v1966, %v2158
        %v2160 = vpop.f32.mrb[0].mxu0
        %v2161 = vadd.f32 %v1968, %v2160
        %v2162 = vpop.f32.mrb[0].mxu0
        %v2163 = vadd.f32 %v1970, %v2162
        %v2164 = vpop.f32.mrb[0].mxu0
        %v2165 = vadd.f32 %v1972, %v2164
        %2166 = vmatprep.mubr.bf16.mxu0 %v1448
        %2167 = vmatmul.mubr.bf16.gmra.mrb[0].mxu0 %v1447
        %v2168 = vpop.f32.mrb[0].mxu0
        %v2169 = vadd.f32 %v1976, %v2168
        %v2170 = vpop.f32.mrb[0].mxu0
        %v2171 = vadd.f32 %v1978, %v2170
        %v2172 = vpop.f32.mrb[0].mxu0
        %v2173 = vadd.f32 %v1980, %v2172
        %v2174 = vpop.f32.mrb[0].mxu0
        %v2175 = vadd.f32 %v1982, %v2174
        %2176 = vmatprep.mubr.bf16.mxu0 %v1452
        %2177 = vmatmul.mubr.bf16.gmra.mrb[0].mxu0 %v1451
        %v2178 = vpop.f32.mrb[0].mxu0
        %v2179 = vadd.f32 %v1986, %v2178
        %v2180 = vpop.f32.mrb[0].mxu0
        %v2181 = vadd.f32 %v1988, %v2180
        %v2182 = vpop.f32.mrb[0].mxu0
        %v2183 = vadd.f32 %v1990, %v2182
        %v2184 = vpop.f32.mrb[0].mxu0
        %v2185 = vadd.f32 %v1992, %v2184
        %2186 = vmatprep.mubr.bf16.mxu0 %v1456
        %2187 = vmatmul.mubr.bf16.gmra.mrb[0].mxu0 %v1455
        %v2188 = vpop.f32.mrb[0].mxu0
        %v2189 = vadd.f32 %v1996, %v2188
        %v2190 = vpop.f32.mrb[0].mxu0
        %v2191 = vadd.f32 %v1998, %v2190
        %v2192 = vpop.f32.mrb[0].mxu0
        %v2193 = vadd.f32 %v2000, %v2192
        %v2194 = vpop.f32.mrb[0].mxu0
        %v2195 = vadd.f32 %v2002, %v2194
        %2196 = vmatprep.mubr.bf16.mxu0 %v1460
        %2197 = vmatmul.mubr.bf16.gmra.mrb[0].mxu0 %v1459
        %v2198 = vpop.f32.mrb[0].mxu0
        %v2199 = vadd.f32 %v2006, %v2198
        %v2200 = vpop.f32.mrb[0].mxu0
        %v2201 = vadd.f32 %v2008, %v2200
        %v2202 = vpop.f32.mrb[0].mxu0
        %v2203 = vadd.f32 %v2010, %v2202
        %v2204 = vpop.f32.mrb[0].mxu0
        %v2205 = vadd.f32 %v2012, %v2204
        %2206 = vmatprep.mubr.bf16.mxu0 %v1464
        %2207 = vmatmul.mubr.bf16.gmra.mrb[0].mxu0 %v1463
        %v2208 = vpop.f32.mrb[0].mxu0
        %v2209 = vadd.f32 %v2016, %v2208
        %v2210 = vpop.f32.mrb[0].mxu0
        %v2211 = vadd.f32 %v2018, %v2210
        %v2212 = vpop.f32.mrb[0].mxu0
        %v2213 = vadd.f32 %v2020, %v2212
        %v2214 = vpop.f32.mrb[0].mxu0
        %v2215 = vadd.f32 %v2022, %v2214
        %2216 = vmatprep.mubr.bf16.mxu0 %v1468
        %2217 = vmatmul.mubr.bf16.gmra.mrb[0].mxu0 %v1467
        %v2218 = vpop.f32.mrb[0].mxu0
        %v2219 = vadd.f32 %v2026, %v2218
        %v2220 = vpop.f32.mrb[0].mxu0
        %v2221 = vadd.f32 %v2028, %v2220
        %v2222 = vpop.f32.mrb[0].mxu0
        %v2223 = vadd.f32 %v2030, %v2222
        %v2224 = vpop.f32.mrb[0].mxu0
        %v2225 = vadd.f32 %v2032, %v2224
        %2226 = vmatprep.mubr.bf16.mxu0 %v1472
        %2227 = vmatmul.mubr.bf16.gmra.mrb[0].mxu0 %v1471
        %v2228 = vpop.f32.mrb[0].mxu0
        %v2229 = vadd.f32 %v2036, %v2228
        %v2230 = vpop.f32.mrb[0].mxu0
        %v2231 = vadd.f32 %v2038, %v2230
        %v2232 = vpop.f32.mrb[0].mxu0
        %v2233 = vadd.f32 %v2040, %v2232
        %v2234 = vpop.f32.mrb[0].mxu0
        %v2235 = vadd.f32 %v2042, %v2234
        %2236 = vmatprep.mubr.bf16.mxu0 %v1476
        %2237 = vmatmul.mubr.bf16.gmra.mrb[0].mxu0 %v1475
        %v2238 = vpop.f32.mrb[0].mxu0
        %v2239 = vadd.f32 %v2046, %v2238
        %v2240 = vpop.f32.mrb[0].mxu0
        %v2241 = vadd.f32 %v2048, %v2240
        %v2242 = vpop.f32.mrb[0].mxu0
        %v2243 = vadd.f32 %v2050, %v2242
        %v2244 = vpop.f32.mrb[0].mxu0
        %v2245 = vadd.f32 %v2052, %v2244
        %2246 = vmatprep.mubr.bf16.mxu0 %v1480
        %2247 = vmatmul.mubr.bf16.gmra.mrb[0].mxu0 %v1479
        %v2248 = vpop.f32.mrb[0].mxu0
        %v2249 = vadd.f32 %v2056, %v2248
        %v2250 = vpop.f32.mrb[0].mxu0
        %v2251 = vadd.f32 %v2058, %v2250
        %v2252 = vpop.f32.mrb[0].mxu0
        %v2253 = vadd.f32 %v2060, %v2252
        %v2254 = vpop.f32.mrb[0].mxu0
        %v2255 = vadd.f32 %v2062, %v2254
        %2256 = vmatprep.mubr.bf16.mxu0 %v1484
        %2257 = vmatmul.mubr.bf16.gmra.mrb[0].mxu0 %v1483
        %v2258 = vpop.f32.mrb[0].mxu0
        %v2259 = vadd.f32 %v2066, %v2258
        %v2260 = vpop.f32.mrb[0].mxu0
        %v2261 = vadd.f32 %v2068, %v2260
        %v2262 = vpop.f32.mrb[0].mxu0
        %v2263 = vadd.f32 %v2070, %v2262
        %v2264 = vpop.f32.mrb[0].mxu0
        %v2265 = vadd.f32 %v2072, %v2264
        %2266 = vdwg.mxu0
        %v2267 = vmul.f32 %v2109, 0.1
        %v2268 = vmul.f32 %v2111, 0.1
        %v2269 = vmul.f32 %v2113, 0.1
        %v2270 = vmul.f32 %v2115, 0.1
        %v2271 = vmul.f32 %v2119, 0.1
        %v2272 = vmul.f32 %v2121, 0.1
        %v2273 = vmul.f32 %v2123, 0.1
        %v2274 = vmul.f32 %v2125, 0.1
        %v2275 = vmul.f32 %v2129, 0.1
        %v2276 = vmul.f32 %v2131, 0.1
        %v2277 = vmul.f32 %v2133, 0.1
        %v2278 = vmul.f32 %v2135, 0.1
        %v2279 = vmul.f32 %v2139, 0.1
        %v2280 = vmul.f32 %v2141, 0.1
        %v2281 = vmul.f32 %v2143, 0.1
        %v2282 = vmul.f32 %v2145, 0.1
        %v2283 = vmul.f32 %v2149, 0.1
        %v2284 = vmul.f32 %v2151, 0.1
        %v2285 = vmul.f32 %v2153, 0.1
        %v2286 = vmul.f32 %v2155, 0.1
        %v2287 = vmul.f32 %v2159, 0.1
        %v2288 = vmul.f32 %v2161, 0.1
        %v2289 = vmul.f32 %v2163, 0.1
        %v2290 = vmul.f32 %v2165, 0.1
        %v2291 = vmul.f32 %v2169, 0.1
        %v2292 = vmul.f32 %v2171, 0.1
        %v2293 = vmul.f32 %v2173, 0.1
        %v2294 = vmul.f32 %v2175, 0.1
        %v2295 = vmul.f32 %v2179, 0.1
        %v2296 = vmul.f32 %v2181, 0.1
        %v2297 = vmul.f32 %v2183, 0.1
        %v2298 = vmul.f32 %v2185, 0.1
        %v2299 = vmul.f32 %v2189, 0.1
        %v2300 = vmul.f32 %v2191, 0.1
        %v2301 = vmul.f32 %v2193, 0.1
        %v2302 = vmul.f32 %v2195, 0.1
        %v2303 = vmul.f32 %v2199, 0.1
        %v2304 = vmul.f32 %v2201, 0.1
        %v2305 = vmul.f32 %v2203, 0.1
        %v2306 = vmul.f32 %v2205, 0.1
        %v2307 = vmul.f32 %v2209, 0.1
        %v2308 = vmul.f32 %v2211, 0.1
        %v2309 = vmul.f32 %v2213, 0.1
        %v2310 = vmul.f32 %v2215, 0.1
        %v2311 = vmul.f32 %v2219, 0.1
        %v2312 = vmul.f32 %v2221, 0.1
        %v2313 = vmul.f32 %v2223, 0.1
        %v2314 = vmul.f32 %v2225, 0.1
        %v2315 = vmul.f32 %v2229, 0.1
        %v2316 = vmul.f32 %v2231, 0.1
        %v2317 = vmul.f32 %v2233, 0.1
        %v2318 = vmul.f32 %v2235, 0.1
        %v2319 = vmul.f32 %v2239, 0.1
        %v2320 = vmul.f32 %v2241, 0.1
        %v2321 = vmul.f32 %v2243, 0.1
        %v2322 = vmul.f32 %v2245, 0.1
        %v2323 = vmul.f32 %v2249, 0.1
        %v2324 = vmul.f32 %v2251, 0.1
        %v2325 = vmul.f32 %v2253, 0.1
        %v2326 = vmul.f32 %v2255, 0.1
        %v2327 = vmul.f32 %v2259, 0.1
        %v2328 = vmul.f32 %v2261, 0.1
        %v2329 = vmul.f32 %v2263, 0.1
        %v2330 = vmul.f32 %v2265, 0.1
        %v2331 = vsub.f32 %v2267, 0.9
        %v2332 = vsub.f32 %v2268, 0.9
        %v2333 = vsub.f32 %v2269, 0.9
        %v2334 = vsub.f32 %v2270, 0.9
        %v2335 = vsub.f32 %v2271, 0.9
        %v2336 = vsub.f32 %v2272, 0.9
        %v2337 = vsub.f32 %v2273, 0.9
        %v2338 = vsub.f32 %v2274, 0.9
        %v2339 = vsub.f32 %v2275, 0.9
        %v2340 = vsub.f32 %v2276, 0.9
        %v2341 = vsub.f32 %v2277, 0.9
        %v2342 = vsub.f32 %v2278, 0.9
        %v2343 = vsub.f32 %v2279, 0.9
        %v2344 = vsub.f32 %v2280, 0.9
        %v2345 = vsub.f32 %v2281, 0.9
        %v2346 = vsub.f32 %v2282, 0.9
        %v2347 = vsub.f32 %v2283, 0.9
        %v2348 = vsub.f32 %v2284, 0.9
        %v2349 = vsub.f32 %v2285, 0.9
        %v2350 = vsub.f32 %v2286, 0.9
        %v2351 = vsub.f32 %v2287, 0.9
        %v2352 = vsub.f32 %v2288, 0.9
        %v2353 = vsub.f32 %v2289, 0.9
        %v2354 = vsub.f32 %v2290, 0.9
        %v2355 = vsub.f32 %v2291, 0.9
        %v2356 = vsub.f32 %v2292, 0.9
        %v2357 = vsub.f32 %v2293, 0.9
        %v2358 = vsub.f32 %v2294, 0.9
        %v2359 = vsub.f32 %v2295, 0.9
        %v2360 = vsub.f32 %v2296, 0.9
        %v2361 = vsub.f32 %v2297, 0.9
        %v2362 = vsub.f32 %v2298, 0.9
        %v2363 = vsub.f32 %v2299, 0.9
        %v2364 = vsub.f32 %v2300, 0.9
        %v2365 = vsub.f32 %v2301, 0.9
        %v2366 = vsub.f32 %v2302, 0.9
        %v2367 = vsub.f32 %v2303, 0.9
        %v2368 = vsub.f32 %v2304, 0.9
        %v2369 = vsub.f32 %v2305, 0.9
        %v2370 = vsub.f32 %v2306, 0.9
        %v2371 = vsub.f32 %v2307, 0.9
        %v2372 = vsub.f32 %v2308, 0.9
        %v2373 = vsub.f32 %v2309, 0.9
        %v2374 = vsub.f32 %v2310, 0.9
        %v2375 = vsub.f32 %v2311, 0.9
        %v2376 = vsub.f32 %v2312, 0.9
        %v2377 = vsub.f32 %v2313, 0.9
        %v2378 = vsub.f32 %v2314, 0.9
        %v2379 = vsub.f32 %v2315, 0.9
        %v2380 = vsub.f32 %v2316, 0.9
        %v2381 = vsub.f32 %v2317, 0.9
        %v2382 = vsub.f32 %v2318, 0.9
        %v2383 = vsub.f32 %v2319, 0.9
        %v2384 = vsub.f32 %v2320, 0.9
        %v2385 = vsub.f32 %v2321, 0.9
        %v2386 = vsub.f32 %v2322, 0.9
        %v2387 = vsub.f32 %v2323, 0.9
        %v2388 = vsub.f32 %v2324, 0.9
        %v2389 = vsub.f32 %v2325, 0.9
        %v2390 = vsub.f32 %v2326, 0.9
        %v2391 = vsub.f32 %v2327, 0.9
        %v2392 = vsub.f32 %v2328, 0.9
        %v2393 = vsub.f32 %v2329, 0.9
        %v2394 = vsub.f32 %v2330, 0.9
        %v2395 = vadd.f32 %v2267, 0.9
        %v2396 = vadd.f32 %v2268, 0.9
        %v2397 = vadd.f32 %v2269, 0.9
        %v2398 = vadd.f32 %v2270, 0.9
        %v2399 = vadd.f32 %v2271, 0.9
        %v2400 = vadd.f32 %v2272, 0.9
        %v2401 = vadd.f32 %v2273, 0.9
        %v2402 = vadd.f32 %v2274, 0.9
        %v2403 = vadd.f32 %v2275, 0.9
        %v2404 = vadd.f32 %v2276, 0.9
        %v2405 = vadd.f32 %v2277, 0.9
        %v2406 = vadd.f32 %v2278, 0.9
        %v2407 = vadd.f32 %v2279, 0.9
        %v2408 = vadd.f32 %v2280, 0.9
        %v2409 = vadd.f32 %v2281, 0.9
        %v2410 = vadd.f32 %v2282, 0.9
        %v2411 = vadd.f32 %v2283, 0.9
        %v2412 = vadd.f32 %v2284, 0.9
        %v2413 = vadd.f32 %v2285, 0.9
        %v2414 = vadd.f32 %v2286, 0.9
        %v2415 = vadd.f32 %v2287, 0.9
        %v2416 = vadd.f32 %v2288, 0.9
        %v2417 = vadd.f32 %v2289, 0.9
        %v2418 = vadd.f32 %v2290, 0.9
        %v2419 = vadd.f32 %v2291, 0.9
        %v2420 = vadd.f32 %v2292, 0.9
        %v2421 = vadd.f32 %v2293, 0.9
        %v2422 = vadd.f32 %v2294, 0.9
        %v2423 = vadd.f32 %v2295, 0.9
        %v2424 = vadd.f32 %v2296, 0.9
        %v2425 = vadd.f32 %v2297, 0.9
        %v2426 = vadd.f32 %v2298, 0.9
        %v2427 = vadd.f32 %v2299, 0.9
        %v2428 = vadd.f32 %v2300, 0.9
        %v2429 = vadd.f32 %v2301, 0.9
        %v2430 = vadd.f32 %v2302, 0.9
        %v2431 = vadd.f32 %v2303, 0.9
        %v2432 = vadd.f32 %v2304, 0.9
        %v2433 = vadd.f32 %v2305, 0.9
        %v2434 = vadd.f32 %v2306, 0.9
        %v2435 = vadd.f32 %v2307, 0.9
        %v2436 = vadd.f32 %v2308, 0.9
        %v2437 = vadd.f32 %v2309, 0.9
        %v2438 = vadd.f32 %v2310, 0.9
        %v2439 = vadd.f32 %v2311, 0.9
        %v2440 = vadd.f32 %v2312, 0.9
        %v2441 = vadd.f32 %v2313, 0.9
        %v2442 = vadd.f32 %v2314, 0.9
        %v2443 = vadd.f32 %v2315, 0.9
        %v2444 = vadd.f32 %v2316, 0.9
        %v2445 = vadd.f32 %v2317, 0.9
        %v2446 = vadd.f32 %v2318, 0.9
        %v2447 = vadd.f32 %v2319, 0.9
        %v2448 = vadd.f32 %v2320, 0.9
        %v2449 = vadd.f32 %v2321, 0.9
        %v2450 = vadd.f32 %v2322, 0.9
        %v2451 = vadd.f32 %v2323, 0.9
        %v2452 = vadd.f32 %v2324, 0.9
        %v2453 = vadd.f32 %v2325, 0.9
        %v2454 = vadd.f32 %v2326, 0.9
        %v2455 = vadd.f32 %v2327, 0.9
        %v2456 = vadd.f32 %v2328, 0.9
        %v2457 = vadd.f32 %v2329, 0.9
        %v2458 = vadd.f32 %v2330, 0.9
        %v2459 = vmin.f32 %v2395, %v2109
        %v2460 = vmin.f32 %v2396, %v2111
        %v2461 = vmin.f32 %v2397, %v2113
        %v2462 = vmin.f32 %v2398, %v2115
        %v2463 = vmin.f32 %v2399, %v2119
        %v2464 = vmin.f32 %v2400, %v2121
        %v2465 = vmin.f32 %v2401, %v2123
        %v2466 = vmin.f32 %v2402, %v2125
        %v2467 = vmin.f32 %v2403, %v2129
        %v2468 = vmin.f32 %v2404, %v2131
        %v2469 = vmin.f32 %v2405, %v2133
        %v2470 = vmin.f32 %v2406, %v2135
        %v2471 = vmin.f32 %v2407, %v2139
        %v2472 = vmin.f32 %v2408, %v2141
        %v2473 = vmin.f32 %v2409, %v2143
        %v2474 = vmin.f32 %v2410, %v2145
        %v2475 = vmin.f32 %v2411, %v2149
        %v2476 = vmin.f32 %v2412, %v2151
        %v2477 = vmin.f32 %v2413, %v2153
        %v2478 = vmin.f32 %v2414, %v2155
        %v2479 = vmin.f32 %v2415, %v2159
        %v2480 = vmin.f32 %v2416, %v2161
        %v2481 = vmin.f32 %v2417, %v2163
        %v2482 = vmin.f32 %v2418, %v2165
        %v2483 = vmin.f32 %v2419, %v2169
        %v2484 = vmin.f32 %v2420, %v2171
        %v2485 = vmin.f32 %v2421, %v2173
        %v2486 = vmin.f32 %v2422, %v2175
        %v2487 = vmin.f32 %v2423, %v2179
        %v2488 = vmin.f32 %v2424, %v2181
        %v2489 = vmin.f32 %v2425, %v2183
        %v2490 = vmin.f32 %v2426, %v2185
        %v2491 = vmin.f32 %v2427, %v2189
        %v2492 = vmin.f32 %v2428, %v2191
        %v2493 = vmin.f32 %v2429, %v2193
        %v2494 = vmin.f32 %v2430, %v2195
        %v2495 = vmin.f32 %v2431, %v2199
        %v2496 = vmin.f32 %v2432, %v2201
        %v2497 = vmin.f32 %v2433, %v2203
        %v2498 = vmin.f32 %v2434, %v2205
        %v2499 = vmin.f32 %v2435, %v2209
        %v2500 = vmin.f32 %v2436, %v2211
        %v2501 = vmin.f32 %v2437, %v2213
        %v2502 = vmin.f32 %v2438, %v2215
        %v2503 = vmin.f32 %v2439, %v2219
        %v2504 = vmin.f32 %v2440, %v2221
        %v2505 = vmin.f32 %v2441, %v2223
        %v2506 = vmin.f32 %v2442, %v2225
        %v2507 = vmin.f32 %v2443, %v2229
        %v2508 = vmin.f32 %v2444, %v2231
        %v2509 = vmin.f32 %v2445, %v2233
        %v2510 = vmin.f32 %v2446, %v2235
        %v2511 = vmin.f32 %v2447, %v2239
        %v2512 = vmin.f32 %v2448, %v2241
        %v2513 = vmin.f32 %v2449, %v2243
        %v2514 = vmin.f32 %v2450, %v2245
        %v2515 = vmin.f32 %v2451, %v2249
        %v2516 = vmin.f32 %v2452, %v2251
        %v2517 = vmin.f32 %v2453, %v2253
        %v2518 = vmin.f32 %v2454, %v2255
        %v2519 = vmin.f32 %v2455, %v2259
        %v2520 = vmin.f32 %v2456, %v2261
        %v2521 = vmin.f32 %v2457, %v2263
        %v2522 = vmin.f32 %v2458, %v2265
        %v2523 = vmax.f32 %v2331, %v2459
        %v2524 = vmax.f32 %v2332, %v2460
        %v2525 = vmax.f32 %v2333, %v2461
        %v2526 = vmax.f32 %v2334, %v2462
        %v2527 = vmax.f32 %v2335, %v2463
        %v2528 = vmax.f32 %v2336, %v2464
        %v2529 = vmax.f32 %v2337, %v2465
        %v2530 = vmax.f32 %v2338, %v2466
        %v2531 = vmax.f32 %v2339, %v2467
        %v2532 = vmax.f32 %v2340, %v2468
        %v2533 = vmax.f32 %v2341, %v2469
        %v2534 = vmax.f32 %v2342, %v2470
        %v2535 = vmax.f32 %v2343, %v2471
        %v2536 = vmax.f32 %v2344, %v2472
        %v2537 = vmax.f32 %v2345, %v2473
        %v2538 = vmax.f32 %v2346, %v2474
        %v2539 = vmax.f32 %v2347, %v2475
        %v2540 = vmax.f32 %v2348, %v2476
        %v2541 = vmax.f32 %v2349, %v2477
        %v2542 = vmax.f32 %v2350, %v2478
        %v2543 = vmax.f32 %v2351, %v2479
        %v2544 = vmax.f32 %v2352, %v2480
        %v2545 = vmax.f32 %v2353, %v2481
        %v2546 = vmax.f32 %v2354, %v2482
        %v2547 = vmax.f32 %v2355, %v2483
        %v2548 = vmax.f32 %v2356, %v2484
        %v2549 = vmax.f32 %v2357, %v2485
        %v2550 = vmax.f32 %v2358, %v2486
        %v2551 = vmax.f32 %v2359, %v2487
        %v2552 = vmax.f32 %v2360, %v2488
        %v2553 = vmax.f32 %v2361, %v2489
        %v2554 = vmax.f32 %v2362, %v2490
        %v2555 = vmax.f32 %v2363, %v2491
        %v2556 = vmax.f32 %v2364, %v2492
        %v2557 = vmax.f32 %v2365, %v2493
        %v2558 = vmax.f32 %v2366, %v2494
        %v2559 = vmax.f32 %v2367, %v2495
        %v2560 = vmax.f32 %v2368, %v2496
        %v2561 = vmax.f32 %v2369, %v2497
        %v2562 = vmax.f32 %v2370, %v2498
        %v2563 = vmax.f32 %v2371, %v2499
        %v2564 = vmax.f32 %v2372, %v2500
        %v2565 = vmax.f32 %v2373, %v2501
        %v2566 = vmax.f32 %v2374, %v2502
        %v2567 = vmax.f32 %v2375, %v2503
        %v2568 = vmax.f32 %v2376, %v2504
        %v2569 = vmax.f32 %v2377, %v2505
        %v2570 = vmax.f32 %v2378, %v2506
        %v2571 = vmax.f32 %v2379, %v2507
        %v2572 = vmax.f32 %v2380, %v2508
        %v2573 = vmax.f32 %v2381, %v2509
        %v2574 = vmax.f32 %v2382, %v2510
        %v2575 = vmax.f32 %v2383, %v2511
        %v2576 = vmax.f32 %v2384, %v2512
        %v2577 = vmax.f32 %v2385, %v2513
        %v2578 = vmax.f32 %v2386, %v2514
        %v2579 = vmax.f32 %v2387, %v2515
        %v2580 = vmax.f32 %v2388, %v2516
        %v2581 = vmax.f32 %v2389, %v2517
        %v2582 = vmax.f32 %v2390, %v2518
        %v2583 = vmax.f32 %v2391, %v2519
        %v2584 = vmax.f32 %v2392, %v2520
        %v2585 = vmax.f32 %v2393, %v2521
        %v2586 = vmax.f32 %v2394, %v2522
        %2587 = vst [vmem:[%s230] sm:$0xff] %v2523
        %2588 = vst [vmem:[%s230 + $0x8] sm:$0xff] %v2524
        %2589 = vst [vmem:[%s230 + $0x10] sm:$0xff] %v2525
        %2590 = vst [vmem:[%s230 + $0x18] sm:$0xff] %v2526
        %2591 = vst [vmem:[%s230 + $0x20] sm:$0xff] %v2527
        %2592 = vst [vmem:[%s230 + $0x28] sm:$0xff] %v2528
        %2593 = vst [vmem:[%s230 + $0x30] sm:$0xff] %v2529
        %2594 = vst [vmem:[%s230 + $0x38] sm:$0xff] %v2530
        %2595 = vst [vmem:[%s230 + $0x40] sm:$0xff] %v2531
        %2596 = vst [vmem:[%s230 + $0x48] sm:$0xff] %v2532
        %2597 = vst [vmem:[%s230 + $0x50] sm:$0xff] %v2533
        %2598 = vst [vmem:[%s230 + $0x58] sm:$0xff] %v2534
        %2599 = vst [vmem:[%s230 + $0x60] sm:$0xff] %v2535
        %2600 = vst [vmem:[%s230 + $0x68] sm:$0xff] %v2536
        %2601 = vst [vmem:[%s230 + $0x70] sm:$0xff] %v2537
        %2602 = vst [vmem:[%s230 + $0x78] sm:$0xff] %v2538
        %2603 = vst [vmem:[%s230 + $0x80] sm:$0xff] %v2539
        %2604 = vst [vmem:[%s230 + $0x88] sm:$0xff] %v2540
        %2605 = vst [vmem:[%s230 + $0x90] sm:$0xff] %v2541
        %2606 = vst [vmem:[%s230 + $0x98] sm:$0xff] %v2542
        %2607 = vst [vmem:[%s230 + $0xa0] sm:$0xff] %v2543
        %2608 = vst [vmem:[%s230 + $0xa8] sm:$0xff] %v2544
        %2609 = vst [vmem:[%s230 + $0xb0] sm:$0xff] %v2545
        %2610 = vst [vmem:[%s230 + $0xb8] sm:$0xff] %v2546
        %2611 = vst [vmem:[%s230 + $0xc0] sm:$0xff] %v2547
        %2612 = vst [vmem:[%s230 + $0xc8] sm:$0xff] %v2548
        %2613 = vst [vmem:[%s230 + $0xd0] sm:$0xff] %v2549
        %2614 = vst [vmem:[%s230 + $0xd8] sm:$0xff] %v2550
        %2615 = vst [vmem:[%s230 + $0xe0] sm:$0xff] %v2551
        %2616 = vst [vmem:[%s230 + $0xe8] sm:$0xff] %v2552
        %2617 = vst [vmem:[%s230 + $0xf0] sm:$0xff] %v2553
        %2618 = vst [vmem:[%s230 + $0xf8] sm:$0xff] %v2554
        %2619 = vst [vmem:[%s230 + $0x100] sm:$0xff] %v2555
        %2620 = vst [vmem:[%s230 + $0x108] sm:$0xff] %v2556
        %2621 = vst [vmem:[%s230 + $0x110] sm:$0xff] %v2557
        %2622 = vst [vmem:[%s230 + $0x118] sm:$0xff] %v2558
        %2623 = vst [vmem:[%s230 + $0x120] sm:$0xff] %v2559
        %2624 = vst [vmem:[%s230 + $0x128] sm:$0xff] %v2560
        %2625 = vst [vmem:[%s230 + $0x130] sm:$0xff] %v2561
        %2626 = vst [vmem:[%s230 + $0x138] sm:$0xff] %v2562
        %2627 = vst [vmem:[%s230 + $0x140] sm:$0xff] %v2563
        %2628 = vst [vmem:[%s230 + $0x148] sm:$0xff] %v2564
        %2629 = vst [vmem:[%s230 + $0x150] sm:$0xff] %v2565
        %2630 = vst [vmem:[%s230 + $0x158] sm:$0xff] %v2566
        %2631 = vst [vmem:[%s230 + $0x160] sm:$0xff] %v2567
        %2632 = vst [vmem:[%s230 + $0x168] sm:$0xff] %v2568
        %2633 = vst [vmem:[%s230 + $0x170] sm:$0xff] %v2569
        %2634 = vst [vmem:[%s230 + $0x178] sm:$0xff] %v2570
        %2635 = vst [vmem:[%s230 + $0x180] sm:$0xff] %v2571
        %2636 = vst [vmem:[%s230 + $0x188] sm:$0xff] %v2572
        %2637 = vst [vmem:[%s230 + $0x190] sm:$0xff] %v2573
        %2638 = vst [vmem:[%s230 + $0x198] sm:$0xff] %v2574
        %2639 = vst [vmem:[%s230 + $0x1a0] sm:$0xff] %v2575
        %2640 = vst [vmem:[%s230 + $0x1a8] sm:$0xff] %v2576
        %2641 = vst [vmem:[%s230 + $0x1b0] sm:$0xff] %v2577
        %2642 = vst [vmem:[%s230 + $0x1b8] sm:$0xff] %v2578
        %2643 = vst [vmem:[%s230 + $0x1c0] sm:$0xff] %v2579
        %2644 = vst [vmem:[%s230 + $0x1c8] sm:$0xff] %v2580
        %2645 = vst [vmem:[%s230 + $0x1d0] sm:$0xff] %v2581
        %2646 = vst [vmem:[%s230 + $0x1d8] sm:$0xff] %v2582
        %2647 = vst [vmem:[%s230 + $0x1e0] sm:$0xff] %v2583
        %2648 = vst [vmem:[%s230 + $0x1e8] sm:$0xff] %v2584
        %2649 = vst [vmem:[%s230 + $0x1f0] sm:$0xff] %v2585
        %2650 = vst [vmem:[%s230 + $0x1f8] sm:$0xff] %v2586
        %s2651 = sand.u32 %s137, 1
        %s2652 = scalar_lea.sflag [#allocation3], %s2651
        %s2653 = sand.u32 %s137, 1
        %s2654 = smul.addr %s2653, 512
        %s2655 = scalar_lea.vmem [#allocation2], %s2654
        // Predicated region
        $region41: #{tpu_custom_call.1} parent=39 // pred_check
          %p2656 = pneg %p147
        $region42: #{tpu_custom_call.1} parent=39 // pred_check_branch
          %2658 = sbr.rel (%p2656) target = $region44
        $region43: #{tpu_custom_call.1} parent=39 // pred_region
          %s2659 = smul.u32 32, %s19
          %s2660 = ssub.s32 125, %s2659
          %p2661 = scmp.lt.s32.totalorder %s2660, 32
          %s2662 = scalar_select %p2661, %s2660, 32
          %s2663 = smul.u32 128, %s2662
          %s2664 = smul.u32 %s2663, 2
          %s2666 = ssub.s32 8192, %s2664
          %2667 = vsyncadd %s2652, %s2666
          %p2668 = scmp.ne.s32.totalorder 0, %s2664
          %s2669 = smul.addr %s2659, 2
          %s2670 = smul.addr %s2669, 128
          %s2671 = scalar_lea.hbm %s5, %s2670
          %s2672 = smul.u32 16, %s2662
          %s2673 = sshll.u32 %s2655, 4
          %s2674 = int_to_ptr.vmem [resolvable:$true] %s2673
          %s2675 = sshll.u32 %s2672, 4
          %2679 = dma.vmem_to_hbm [thread:$0]  (%p2668), %s2674, %s2675, %s2671, %s2652, 256, 256, 16
        $region44: #{tpu_custom_call.1} parent=39 // pred_fallthru
          _
      $region40: #{tpu_custom_call.1} parent=5 // pred_fallthru
        _
      %p2680 = scmp.le.s32.totalorder 2, %s14
      // Predicated region
      $region45: #{tpu_custom_call.1} parent=5 // pred_check
        %p2681 = pneg %p2680
      $region46: #{tpu_custom_call.1} parent=5 // pred_check_branch
        %2683 = sbr.rel (%p2681) target = $region48
      $region47: #{tpu_custom_call.1} parent=5 // pred_region
        %s2684 = ssub.s32 %s14, 2
        // Predicated region
        $region49: #{tpu_custom_call.1} parent=47 // pred_check
          %p2685 = pneg %p153
        $region50: #{tpu_custom_call.1} parent=47 // pred_check_branch
          %2687 = sbr.rel (%p2685) target = $region52
        $region51: #{tpu_custom_call.1} parent=47 // pred_region
          %s2688 = sand.u32 %s138, 1
          %s2689 = scalar_lea.sflag [#allocation3], %s2688
          %s2690 = sand.u32 %s138, 1
          %s2691 = smul.addr %s2690, 512
          %s2692 = scalar_lea.vmem [#allocation2], %s2691
          %2693 = dma.done %s2689, 8192
        $region52: #{tpu_custom_call.1} parent=47 // pred_fallthru
          _
      $region48: #{tpu_custom_call.1} parent=5 // pred_fallthru
        _
    $region6: #{tpu_custom_call.1} parent=1 // loop_footer
      %s18 = sadd.s32 1, %s14
    $region7: #{tpu_custom_call.1} parent=1 // loop_footer_branch
      %13 = sbr.rel target = $region3
    $region8: #{tpu_custom_call.1} parent=1 // loop_exit
      _
    %2694 = vsyncpa [#allocation3], 1
    %s2695 = scalar_lea.sflag [#allocation3], 1
    %2696 = vsyncpa %s2695, 1

</llo_original>
